<compile_context>
chip_gen: v5e
topology: v5e:2x2
jax: 0.10.0
libtpu: 0.0.40
codegen_flags: <defaults>
</compile_context>

<pallas_src>
import functools
import math

import jax
import jax.numpy as jnp
from jax import lax
from jax.experimental import pallas as pl
from jax.experimental.pallas import tpu as pltpu  # noqa: F401  (no TPU-specific params needed after review)

# ---- small BERT-like config ----
VOCAB = 50
VOCAB_PAD = 64                 # ids < 64 can never alias the pos rows placed at >= 64
MAX_POS = 16
HIDDEN = 32
NUM_HEADS = 4
HEAD_DIM = HIDDEN // NUM_HEADS
INTERMEDIATE = 64
NUM_LAYERS = 2
NUM_CLASSES = 28
CLS_PAD = 128                  # classifier output padded to a full lane width
LN_EPS = 1e-12

# ---- packed misc table layout (single (TBL_ROWS, 128) f32 input) ----
TBL_EMB = 0                        # rows [0,64): word emb (cols 0:32); rows [64,80): pos+type emb
TBL_CLS_W = VOCAB_PAD + MAX_POS    # 80: rows [80,112): classifier weight (cols 0:128)
TBL_EMB_G = TBL_CLS_W + HIDDEN     # 112: embedding LayerNorm gamma (cols 0:32)
TBL_EMB_B = TBL_EMB_G + 1          # 113: embedding LayerNorm beta  (cols 0:32)
TBL_CLS_B = TBL_EMB_B + 1          # 114: classifier bias (cols 0:128)
TBL_ROWS = 120                     # padded to a multiple of 8 sublanes

# ---- packed per-layer vector rows (layer_vecs: (L, 8, 128) f32) ----
(ROW_QKV_B, ROW_O_B, ROW_LN1_G, ROW_LN1_B,
 ROW_FF1_B, ROW_FF2_B, ROW_LN2_G, ROW_LN2_B) = range(8)


# ---------------- fused Pallas kernel (whole forward pass) ----------------

def _bert_fused_kernel(ids_ref, msk_ref, tbl_ref, w_in_ref, w_ff2_ref, vec_ref,
                       logits_ref, *, batch, seq):
    bs = batch * seq
    f32 = jnp.float32
    emb_rows = VOCAB_PAD + MAX_POS

    def layernorm(v, g, b):
        mu = jnp.mean(v, axis=-1, keepdims=True)
        var = jnp.mean((v - mu) ** 2, axis=-1, keepdims=True)
        return (v - mu) * lax.rsqrt(var + LN_EPS) * g + b

    def gelu(v):
        # TODO(synk): HF BERT uses exact erf-based GELU; tanh approximation kept here.
        return 0.5 * v * (1.0 + jnp.tanh(0.7978845608028654 * (v + 0.044715 * v * v * v)))

    # ---- embeddings: single "two-hot" MXU gather = word[id] + (pos + type0)[r % S] ----
    ids = ids_ref[...]                                               # (BS, 1) int32
    col = lax.broadcasted_iota(jnp.int32, (bs, emb_rows), 1)
    row = lax.broadcasted_iota(jnp.int32, (bs, emb_rows), 0)
    b_id = jnp.floor((row.astype(f32) + 0.5) * (1.0 / seq)).astype(jnp.int32)   # r // S
    pos = row - b_id * seq                                           # r % S
    twohot = ((col == ids) | (col == pos + VOCAB_PAD)).astype(f32)   # (BS, 80)
    x = jnp.dot(twohot, tbl_ref[TBL_EMB:TBL_EMB + emb_rows, 0:HIDDEN],
                preferred_element_type=f32)                          # (BS, H)
    x = layernorm(x, tbl_ref[TBL_EMB_G:TBL_EMB_G + 1, 0:HIDDEN],
                  tbl_ref[TBL_EMB_B:TBL_EMB_B + 1, 0:HIDDEN])

    # ---- block-diagonal additive attention-mask bias, built in-kernel ----
    rq = lax.broadcasted_iota(jnp.int32, (bs, bs), 0).astype(f32)
    rk = lax.broadcasted_iota(jnp.int32, (bs, bs), 1).astype(f32)
    same_batch = (jnp.floor((rq + 0.5) * (1.0 / seq))
                  == jnp.floor((rk + 0.5) * (1.0 / seq)))
    key_ok = msk_ref[...] != 0                                       # (1, BS) key validity
    bias = jnp.where(same_batch & key_ok, 0.0, -10000.0)             # (BS, BS)

    for l in range(NUM_LAYERS):                                      # static unroll
        w = w_in_ref[l]                                              # (H, 3H + H + I) packed
        vec = vec_ref[l]                                             # (8, 128) packed vectors

        # fused QKV projection (Q weights/bias carry the 1/sqrt(head_dim) scale)
        qkv = (jnp.dot(x, w[:, 0:3 * HIDDEN], preferred_element_type=f32)
               + vec[ROW_QKV_B:ROW_QKV_B + 1, 0:3 * HIDDEN])
        q = qkv[:, 0 * HIDDEN:1 * HIDDEN]
        k = qkv[:, 1 * HIDDEN:2 * HIDDEN]
        v = qkv[:, 2 * HIDDEN:3 * HIDDEN]
        k_t = k.T                                                    # one transpose per layer

        # per-head attention; heads are adjacent lane slices
        ctx = []
        for h in range(NUM_HEADS):                                   # static unroll
            sl = slice(h * HEAD_DIM, (h + 1) * HEAD_DIM)
            s = jnp.dot(q[:, sl], k_t[sl, :], preferred_element_type=f32) + bias
            s = s - jnp.max(s, axis=-1, keepdims=True)
            p = jnp.exp(s)
            p = p * pl.reciprocal(jnp.sum(p, axis=-1, keepdims=True), approx=True)
            ctx.append(jnp.dot(p, v[:, sl], preferred_element_type=f32))      # (BS, HD)
        ctx = jnp.concatenate(ctx, axis=-1)                          # (BS, H)

        # single fused output projection + residual + LayerNorm
        attn = (jnp.dot(ctx, w[:, 3 * HIDDEN:4 * HIDDEN], preferred_element_type=f32)
                + vec[ROW_O_B:ROW_O_B + 1, 0:HIDDEN])
        x = layernorm(x + attn, vec[ROW_LN1_G:ROW_LN1_G + 1, 0:HIDDEN],
                      vec[ROW_LN1_B:ROW_LN1_B + 1, 0:HIDDEN])

        # GELU FFN + residual + LayerNorm
        ff = (jnp.dot(x, w[:, 4 * HIDDEN:4 * HIDDEN + INTERMEDIATE],
                      preferred_element_type=f32)
              + vec[ROW_FF1_B:ROW_FF1_B + 1, 0:INTERMEDIATE])
        ff = gelu(ff)
        ff = (jnp.dot(ff, w_ff2_ref[l], preferred_element_type=f32)
              + vec[ROW_FF2_B:ROW_FF2_B + 1, 0:HIDDEN])
        x = layernorm(x + ff, vec[ROW_LN2_G:ROW_LN2_G + 1, 0:HIDDEN],
                      vec[ROW_LN2_B:ROW_LN2_B + 1, 0:HIDDEN])

    # classifier head on all rows (lane-dense 128-wide store); wrapper picks [CLS] rows
    logits_ref[...] = (jnp.dot(x, tbl_ref[TBL_CLS_W:TBL_CLS_W + HIDDEN, :],
                               preferred_element_type=f32)
                       + tbl_ref[TBL_CLS_B:TBL_CLS_B + 1, :])


# ---------------- parameters (already in packed device layout) ----------------

def init_params(key):
    std = 0.02

    def dense(k, shape):
        return jax.random.normal(k, shape, jnp.float32) * std

    keys = jax.random.split(key, 4 + NUM_LAYERS)

    # packed misc table: embeddings + classifier + global LN vectors
    word = dense(keys[0], (VOCAB, HIDDEN))
    pos = dense(keys[1], (MAX_POS, HIDDEN))
    typ = dense(keys[2], (2, HIDDEN))
    cls_w = dense(keys[3], (HIDDEN, NUM_CLASSES))
    tbl = jnp.zeros((TBL_ROWS, CLS_PAD), jnp.float32)
    tbl = tbl.at[TBL_EMB:TBL_EMB + VOCAB, 0:HIDDEN].set(word)
    tbl = tbl.at[VOCAB_PAD:VOCAB_PAD + MAX_POS, 0:HIDDEN].set(pos + typ[0:1])  # token_type_ids == 0
    tbl = tbl.at[TBL_CLS_W:TBL_CLS_W + HIDDEN, 0:NUM_CLASSES].set(cls_w)
    tbl = tbl.at[TBL_EMB_G, 0:HIDDEN].set(1.0)       # embedding LayerNorm gamma
    # embedding LayerNorm beta and classifier bias remain zero

    scale = 1.0 / math.sqrt(HEAD_DIM)                # folded into Q weights (and Q bias if nonzero)
    w_in, w_ff2, vecs = [], [], []
    for i in range(NUM_LAYERS):
        lk = jax.random.split(keys[4 + i], 6)
        wq = dense(lk[0], (HIDDEN, HIDDEN)) * scale
        wk = dense(lk[1], (HIDDEN, HIDDEN))
        wv = dense(lk[2], (HIDDEN, HIDDEN))
        wo = dense(lk[3], (HIDDEN, HIDDEN))
        wf1 = dense(lk[4], (HIDDEN, INTERMEDIATE))
        w_in.append(jnp.concatenate([wq, wk, wv, wo, wf1], axis=1))   # (H, 192)
        w_ff2.append(dense(lk[5], (INTERMEDIATE, HIDDEN)))            # (I, H)
        vec = jnp.zeros((8, CLS_PAD), jnp.float32)                    # biases zero
        vec = vec.at[ROW_LN1_G, 0:HIDDEN].set(1.0)
        vec = vec.at[ROW_LN2_G, 0:HIDDEN].set(1.0)
        vecs.append(vec)

    return {"tbl": tbl,
            "w_in": jnp.stack(w_in),      # (L, H, 3H + H + I)
            "w_ff2": jnp.stack(w_ff2),    # (L, I, H)
            "vecs": jnp.stack(vecs)}      # (L, 8, 128)


# ---------------- wrapper ----------------

def simple_bert_classifier(params, input_ids, attention_mask):
    B, S = input_ids.shape
    assert S <= MAX_POS
    bs = B * S
    # Pure metadata reshapes; all gathers and mask construction happen in-kernel.
    ids_col = input_ids.reshape(bs, 1).astype(jnp.int32)
    msk_row = attention_mask.reshape(1, bs).astype(jnp.int32)

    kernel = functools.partial(_bert_fused_kernel, batch=B, seq=S)
    logits_all = pl.pallas_call(
        kernel,
        out_shape=jax.ShapeDtypeStruct((bs, CLS_PAD), jnp.float32),
    )(ids_col, msk_row, params["tbl"], params["w_in"], params["w_ff2"], params["vecs"])

    # last_hidden_state[:, 0, :] -> classifier; un-pad to NUM_CLASSES
    return logits_all.reshape(B, S, CLS_PAD)[:, 0, :NUM_CLASSES]


if __name__ == "__main__":
    key = jax.random.PRNGKey(0)
    pkey, ikey = jax.random.split(key)
    params = init_params(pkey)

    B, S = 2, 8
    input_ids = jax.random.randint(ikey, (B, S), 0, VOCAB, dtype=jnp.int32)
    attention_mask = jnp.array([[1, 1, 1, 1, 1, 1, 1, 1],
                                [1, 1, 1, 1, 1, 1, 0, 0]], dtype=jnp.int32)

    logits = jax.jit(simple_bert_classifier)(params, input_ids, attention_mask)
    jax.block_until_ready(logits)
    assert logits.shape == (B, NUM_CLASSES) and logits.dtype == jnp.float32
    print("KERNEL_OK")
</pallas_src>

<mosaic_0001>
module attributes {stable_mosaic.version = 11 : i64} {
  func.func @_bert_fused_kernel(%arg0: memref<16x1xi32, #tpu.memory_space<vmem>>, %arg1: memref<1x16xi32, #tpu.memory_space<vmem>>, %arg2: memref<120x128xf32, #tpu.memory_space<vmem>>, %arg3: memref<2x32x192xf32, #tpu.memory_space<vmem>>, %arg4: memref<2x64x32xf32, #tpu.memory_space<vmem>>, %arg5: memref<2x8x128xf32, #tpu.memory_space<vmem>>, %arg6: memref<16x128xf32, #tpu.memory_space<vmem>>) attributes {dimension_semantics = [], scalar_prefetch = 0 : i64, scratch_operands = 0 : i64, tpu.core_type = #tpu.core_type<tc>} {
    %c0 = arith.constant 0 : index
    %c0_0 = arith.constant 0 : index
    %0 = vector.load %arg0[%c0, %c0_0] : memref<16x1xi32, #tpu.memory_space<vmem>>, vector<16x1xi32>
    %1 = tpu.iota {dimensions = array<i32: 1>} : vector<16x80xi32>
    %2 = tpu.iota {dimensions = array<i32: 0>} : vector<16x80xi32>
    %3 = arith.sitofp %2 : vector<16x80xi32> to vector<16x80xf32>
    %cst = arith.constant 5.000000e-01 : f32
    %4 = vector.broadcast %cst : f32 to vector<16x80xf32>
    %5 = arith.addf %3, %4 : vector<16x80xf32>
    %cst_1 = arith.constant 1.250000e-01 : f32
    %6 = vector.broadcast %cst_1 : f32 to vector<16x80xf32>
    %7 = arith.mulf %5, %6 : vector<16x80xf32>
    %8 = math.floor %7 : vector<16x80xf32>
    %9 = arith.fptosi %8 : vector<16x80xf32> to vector<16x80xi32>
    %c8_i32 = arith.constant 8 : i32
    %10 = vector.broadcast %c8_i32 : i32 to vector<16x80xi32>
    %11 = arith.muli %9, %10 : vector<16x80xi32>
    %12 = arith.subi %2, %11 : vector<16x80xi32>
    %13 = vector.broadcast %0 : vector<16x1xi32> to vector<16x80xi32>
    %14 = arith.cmpi eq, %1, %13 : vector<16x80xi32>
    %c64_i32 = arith.constant 64 : i32
    %15 = vector.broadcast %c64_i32 : i32 to vector<16x80xi32>
    %16 = arith.addi %12, %15 : vector<16x80xi32>
    %17 = arith.cmpi eq, %1, %16 : vector<16x80xi32>
    %18 = arith.ori %14, %17 : vector<16x80xi1>
    %19 = arith.extui %18 : vector<16x80xi1> to vector<16x80xi32>
    %20 = arith.sitofp %19 : vector<16x80xi32> to vector<16x80xf32>
    %c0_2 = arith.constant 0 : index
    %c0_3 = arith.constant 0 : index
    %21 = vector.load %arg2[%c0_2, %c0_3] : memref<120x128xf32, #tpu.memory_space<vmem>>, vector<80x32xf32>
    %cst_4 = arith.constant dense<0.000000e+00> : vector<16x32xf32>
    %22 = tpu.matmul %20, %21, %cst_4 {dimension_numbers = #tpu.dot_dimension_numbers<[1], [0], [0], [1], [0, 0, 1, 1], [], []>} : vector<16x80xf32>, vector<80x32xf32>, vector<16x32xf32> -> vector<16x32xf32>
    %c112 = arith.constant 112 : index
    %c0_5 = arith.constant 0 : index
    %23 = vector.load %arg2[%c112, %c0_5] : memref<120x128xf32, #tpu.memory_space<vmem>>, vector<1x32xf32>
    %c113 = arith.constant 113 : index
    %c0_6 = arith.constant 0 : index
    %24 = vector.load %arg2[%c113, %c0_6] : memref<120x128xf32, #tpu.memory_space<vmem>>, vector<1x32xf32>
    %cst_7 = arith.constant dense<0.000000e+00> : vector<16xf32>
    %25 = vector.multi_reduction <add>, %22, %cst_7 [1] : vector<16x32xf32> to vector<16xf32>
    %26 = vector.shape_cast %25 : vector<16xf32> to vector<16x1xf32>
    %cst_8 = arith.constant 3.200000e+01 : f32
    %27 = vector.broadcast %cst_8 : f32 to vector<16x1xf32>
    %28 = arith.divf %26, %27 : vector<16x1xf32>
    %29 = vector.broadcast %28 : vector<16x1xf32> to vector<16x32xf32>
    %30 = arith.subf %22, %29 : vector<16x32xf32>
    %31 = arith.mulf %30, %30 : vector<16x32xf32>
    %cst_9 = arith.constant dense<0.000000e+00> : vector<16xf32>
    %32 = vector.multi_reduction <add>, %31, %cst_9 [1] : vector<16x32xf32> to vector<16xf32>
    %33 = vector.shape_cast %32 : vector<16xf32> to vector<16x1xf32>
    %cst_10 = arith.constant 3.200000e+01 : f32
    %34 = vector.broadcast %cst_10 : f32 to vector<16x1xf32>
    %35 = arith.divf %33, %34 : vector<16x1xf32>
    %36 = vector.broadcast %28 : vector<16x1xf32> to vector<16x32xf32>
    %37 = arith.subf %22, %36 : vector<16x32xf32>
    %cst_11 = arith.constant 9.99999996E-13 : f32
    %38 = vector.broadcast %cst_11 : f32 to vector<16x1xf32>
    %39 = arith.addf %35, %38 : vector<16x1xf32>
    %40 = math.rsqrt %39 : vector<16x1xf32>
    %41 = vector.broadcast %40 : vector<16x1xf32> to vector<16x32xf32>
    %42 = arith.mulf %37, %41 : vector<16x32xf32>
    %43 = vector.broadcast %23 : vector<1x32xf32> to vector<16x32xf32>
    %44 = arith.mulf %42, %43 : vector<16x32xf32>
    %45 = vector.broadcast %24 : vector<1x32xf32> to vector<16x32xf32>
    %46 = arith.addf %44, %45 : vector<16x32xf32>
    %47 = tpu.iota {dimensions = array<i32: 0>} : vector<16x16xi32>
    %48 = arith.sitofp %47 : vector<16x16xi32> to vector<16x16xf32>
    %49 = tpu.iota {dimensions = array<i32: 1>} : vector<16x16xi32>
    %50 = arith.sitofp %49 : vector<16x16xi32> to vector<16x16xf32>
    %cst_12 = arith.constant 5.000000e-01 : f32
    %51 = vector.broadcast %cst_12 : f32 to vector<16x16xf32>
    %52 = arith.addf %48, %51 : vector<16x16xf32>
    %cst_13 = arith.constant 1.250000e-01 : f32
    %53 = vector.broadcast %cst_13 : f32 to vector<16x16xf32>
    %54 = arith.mulf %52, %53 : vector<16x16xf32>
    %55 = math.floor %54 : vector<16x16xf32>
    %cst_14 = arith.constant 5.000000e-01 : f32
    %56 = vector.broadcast %cst_14 : f32 to vector<16x16xf32>
    %57 = arith.addf %50, %56 : vector<16x16xf32>
    %cst_15 = arith.constant 1.250000e-01 : f32
    %58 = vector.broadcast %cst_15 : f32 to vector<16x16xf32>
    %59 = arith.mulf %57, %58 : vector<16x16xf32>
    %60 = math.floor %59 : vector<16x16xf32>
    %61 = arith.cmpf oeq, %55, %60 : vector<16x16xf32>
    %c0_16 = arith.constant 0 : index
    %c0_17 = arith.constant 0 : index
    %62 = vector.load %arg1[%c0_16, %c0_17] : memref<1x16xi32, #tpu.memory_space<vmem>>, vector<1x16xi32>
    %c0_i32 = arith.constant 0 : i32
    %63 = vector.broadcast %c0_i32 : i32 to vector<1x16xi32>
    %64 = arith.cmpi ne, %62, %63 : vector<1x16xi32>
    %65 = vector.broadcast %64 : vector<1x16xi1> to vector<16x16xi1>
    %66 = arith.andi %61, %65 : vector<16x16xi1>
    %cst_18 = arith.constant 0.000000e+00 : f32
    %cst_19 = arith.constant -1.000000e+04 : f32
    %67 = vector.broadcast %cst_18 : f32 to vector<16x16xf32>
    %68 = vector.broadcast %cst_19 : f32 to vector<16x16xf32>
    %69 = arith.select %66, %67, %68 : vector<16x16xi1>, vector<16x16xf32>
    %c0_20 = arith.constant 0 : index
    %c0_21 = arith.constant 0 : index
    %c0_22 = arith.constant 0 : index
    %70 = vector.load %arg3[%c0_20, %c0_21, %c0_22] : memref<2x32x192xf32, #tpu.memory_space<vmem>>, vector<1x32x192xf32>
    %71 = vector.shape_cast %70 : vector<1x32x192xf32> to vector<32x192xf32>
    %c0_23 = arith.constant 0 : index
    %c0_24 = arith.constant 0 : index
    %c0_25 = arith.constant 0 : index
    %72 = vector.load %arg5[%c0_23, %c0_24, %c0_25] : memref<2x8x128xf32, #tpu.memory_space<vmem>>, vector<1x8x128xf32>
    %73 = vector.shape_cast %72 : vector<1x8x128xf32> to vector<8x128xf32>
    %74 = vector.extract_strided_slice %71 {offsets = [0, 0], sizes = [32, 96], strides = [1, 1]} : vector<32x192xf32> to vector<32x96xf32>
    %cst_26 = arith.constant dense<0.000000e+00> : vector<16x96xf32>
    %75 = tpu.matmul %46, %74, %cst_26 {dimension_numbers = #tpu.dot_dimension_numbers<[1], [0], [0], [1], [0, 0, 1, 1], [], []>} : vector<16x32xf32>, vector<32x96xf32>, vector<16x96xf32> -> vector<16x96xf32>
    %76 = vector.extract_strided_slice %73 {offsets = [0, 0], sizes = [1, 96], strides = [1, 1]} : vector<8x128xf32> to vector<1x96xf32>
    %77 = vector.broadcast %76 : vector<1x96xf32> to vector<16x96xf32>
    %78 = arith.addf %75, %77 : vector<16x96xf32>
    %79 = vector.extract_strided_slice %78 {offsets = [0, 0], sizes = [16, 32], strides = [1, 1]} : vector<16x96xf32> to vector<16x32xf32>
    %80 = vector.extract_strided_slice %78 {offsets = [0, 32], sizes = [16, 32], strides = [1, 1]} : vector<16x96xf32> to vector<16x32xf32>
    %81 = vector.extract_strided_slice %78 {offsets = [0, 64], sizes = [16, 32], strides = [1, 1]} : vector<16x96xf32> to vector<16x32xf32>
    %82 = tpu.transpose %80, [1, 0] : vector<16x32xf32> -> vector<32x16xf32>
    %83 = vector.extract_strided_slice %79 {offsets = [0, 0], sizes = [16, 8], strides = [1, 1]} : vector<16x32xf32> to vector<16x8xf32>
    %84 = vector.extract_strided_slice %82 {offsets = [0, 0], sizes = [8, 16], strides = [1, 1]} : vector<32x16xf32> to vector<8x16xf32>
    %cst_27 = arith.constant dense<0.000000e+00> : vector<16x16xf32>
    %85 = tpu.matmul %83, %84, %cst_27 {dimension_numbers = #tpu.dot_dimension_numbers<[1], [0], [0], [1], [0, 0, 1, 1], [], []>} : vector<16x8xf32>, vector<8x16xf32>, vector<16x16xf32> -> vector<16x16xf32>
    %86 = arith.addf %85, %69 : vector<16x16xf32>
    %cst_28 = arith.constant dense<0xFF800000> : vector<16xf32>
    %87 = vector.multi_reduction <maximumf>, %86, %cst_28 [1] : vector<16x16xf32> to vector<16xf32>
    %88 = vector.shape_cast %87 : vector<16xf32> to vector<16x1xf32>
    %89 = vector.broadcast %88 : vector<16x1xf32> to vector<16x16xf32>
    %90 = arith.subf %86, %89 : vector<16x16xf32>
    %91 = math.exp %90 : vector<16x16xf32>
    %cst_29 = arith.constant dense<0.000000e+00> : vector<16xf32>
    %92 = vector.multi_reduction <add>, %91, %cst_29 [1] : vector<16x16xf32> to vector<16xf32>
    %93 = vector.shape_cast %92 : vector<16xf32> to vector<16x1xf32>
    %94 = tpu.reciprocal %93 {approx = true} : vector<16x1xf32> -> vector<16x1xf32>
    %95 = vector.broadcast %94 : vector<16x1xf32> to vector<16x16xf32>
    %96 = arith.mulf %91, %95 : vector<16x16xf32>
    %97 = vector.extract_strided_slice %81 {offsets = [0, 0], sizes = [16, 8], strides = [1, 1]} : vector<16x32xf32> to vector<16x8xf32>
    %cst_30 = arith.constant dense<0.000000e+00> : vector<16x8xf32>
    %98 = tpu.matmul %96, %97, %cst_30 {dimension_numbers = #tpu.dot_dimension_numbers<[1], [0], [0], [1], [0, 0, 1, 1], [], []>} : vector<16x16xf32>, vector<16x8xf32>, vector<16x8xf32> -> vector<16x8xf32>
    %99 = vector.extract_strided_slice %79 {offsets = [0, 8], sizes = [16, 8], strides = [1, 1]} : vector<16x32xf32> to vector<16x8xf32>
    %100 = vector.extract_strided_slice %82 {offsets = [8, 0], sizes = [8, 16], strides = [1, 1]} : vector<32x16xf32> to vector<8x16xf32>
    %cst_31 = arith.constant dense<0.000000e+00> : vector<16x16xf32>
    %101 = tpu.matmul %99, %100, %cst_31 {dimension_numbers = #tpu.dot_dimension_numbers<[1], [0], [0], [1], [0, 0, 1, 1], [], []>} : vector<16x8xf32>, vector<8x16xf32>, vector<16x16xf32> -> vector<16x16xf32>
    %102 = arith.addf %101, %69 : vector<16x16xf32>
    %cst_32 = arith.constant dense<0xFF800000> : vector<16xf32>
    %103 = vector.multi_reduction <maximumf>, %102, %cst_32 [1] : vector<16x16xf32> to vector<16xf32>
    %104 = vector.shape_cast %103 : vector<16xf32> to vector<16x1xf32>
    %105 = vector.broadcast %104 : vector<16x1xf32> to vector<16x16xf32>
    %106 = arith.subf %102, %105 : vector<16x16xf32>
    %107 = math.exp %106 : vector<16x16xf32>
    %cst_33 = arith.constant dense<0.000000e+00> : vector<16xf32>
    %108 = vector.multi_reduction <add>, %107, %cst_33 [1] : vector<16x16xf32> to vector<16xf32>
    %109 = vector.shape_cast %108 : vector<16xf32> to vector<16x1xf32>
    %110 = tpu.reciprocal %109 {approx = true} : vector<16x1xf32> -> vector<16x1xf32>
    %111 = vector.broadcast %110 : vector<16x1xf32> to vector<16x16xf32>
    %112 = arith.mulf %107, %111 : vector<16x16xf32>
    %113 = vector.extract_strided_slice %81 {offsets = [0, 8], sizes = [16, 8], strides = [1, 1]} : vector<16x32xf32> to vector<16x8xf32>
    %cst_34 = arith.constant dense<0.000000e+00> : vector<16x8xf32>
    %114 = tpu.matmul %112, %113, %cst_34 {dimension_numbers = #tpu.dot_dimension_numbers<[1], [0], [0], [1], [0, 0, 1, 1], [], []>} : vector<16x16xf32>, vector<16x8xf32>, vector<16x8xf32> -> vector<16x8xf32>
    %115 = vector.extract_strided_slice %79 {offsets = [0, 16], sizes = [16, 8], strides = [1, 1]} : vector<16x32xf32> to vector<16x8xf32>
    %116 = vector.extract_strided_slice %82 {offsets = [16, 0], sizes = [8, 16], strides = [1, 1]} : vector<32x16xf32> to vector<8x16xf32>
    %cst_35 = arith.constant dense<0.000000e+00> : vector<16x16xf32>
    %117 = tpu.matmul %115, %116, %cst_35 {dimension_numbers = #tpu.dot_dimension_numbers<[1], [0], [0], [1], [0, 0, 1, 1], [], []>} : vector<16x8xf32>, vector<8x16xf32>, vector<16x16xf32> -> vector<16x16xf32>
    %118 = arith.addf %117, %69 : vector<16x16xf32>
    %cst_36 = arith.constant dense<0xFF800000> : vector<16xf32>
    %119 = vector.multi_reduction <maximumf>, %118, %cst_36 [1] : vector<16x16xf32> to vector<16xf32>
    %120 = vector.shape_cast %119 : vector<16xf32> to vector<16x1xf32>
    %121 = vector.broadcast %120 : vector<16x1xf32> to vector<16x16xf32>
    %122 = arith.subf %118, %121 : vector<16x16xf32>
    %123 = math.exp %122 : vector<16x16xf32>
    %cst_37 = arith.constant dense<0.000000e+00> : vector<16xf32>
    %124 = vector.multi_reduction <add>, %123, %cst_37 [1] : vector<16x16xf32> to vector<16xf32>
    %125 = vector.shape_cast %124 : vector<16xf32> to vector<16x1xf32>
    %126 = tpu.reciprocal %125 {approx = true} : vector<16x1xf32> -> vector<16x1xf32>
    %127 = vector.broadcast %126 : vector<16x1xf32> to vector<16x16xf32>
    %128 = arith.mulf %123, %127 : vector<16x16xf32>
    %129 = vector.extract_strided_slice %81 {offsets = [0, 16], sizes = [16, 8], strides = [1, 1]} : vector<16x32xf32> to vector<16x8xf32>
    %cst_38 = arith.constant dense<0.000000e+00> : vector<16x8xf32>
    %130 = tpu.matmul %128, %129, %cst_38 {dimension_numbers = #tpu.dot_dimension_numbers<[1], [0], [0], [1], [0, 0, 1, 1], [], []>} : vector<16x16xf32>, vector<16x8xf32>, vector<16x8xf32> -> vector<16x8xf32>
    %131 = vector.extract_strided_slice %79 {offsets = [0, 24], sizes = [16, 8], strides = [1, 1]} : vector<16x32xf32> to vector<16x8xf32>
    %132 = vector.extract_strided_slice %82 {offsets = [24, 0], sizes = [8, 16], strides = [1, 1]} : vector<32x16xf32> to vector<8x16xf32>
    %cst_39 = arith.constant dense<0.000000e+00> : vector<16x16xf32>
    %133 = tpu.matmul %131, %132, %cst_39 {dimension_numbers = #tpu.dot_dimension_numbers<[1], [0], [0], [1], [0, 0, 1, 1], [], []>} : vector<16x8xf32>, vector<8x16xf32>, vector<16x16xf32> -> vector<16x16xf32>
    %134 = arith.addf %133, %69 : vector<16x16xf32>
    %cst_40 = arith.constant dense<0xFF800000> : vector<16xf32>
    %135 = vector.multi_reduction <maximumf>, %134, %cst_40 [1] : vector<16x16xf32> to vector<16xf32>
    %136 = vector.shape_cast %135 : vector<16xf32> to vector<16x1xf32>
    %137 = vector.broadcast %136 : vector<16x1xf32> to vector<16x16xf32>
    %138 = arith.subf %134, %137 : vector<16x16xf32>
    %139 = math.exp %138 : vector<16x16xf32>
    %cst_41 = arith.constant dense<0.000000e+00> : vector<16xf32>
    %140 = vector.multi_reduction <add>, %139, %cst_41 [1] : vector<16x16xf32> to vector<16xf32>
    %141 = vector.shape_cast %140 : vector<16xf32> to vector<16x1xf32>
    %142 = tpu.reciprocal %141 {approx = true} : vector<16x1xf32> -> vector<16x1xf32>
    %143 = vector.broadcast %142 : vector<16x1xf32> to vector<16x16xf32>
    %144 = arith.mulf %139, %143 : vector<16x16xf32>
    %145 = vector.extract_strided_slice %81 {offsets = [0, 24], sizes = [16, 8], strides = [1, 1]} : vector<16x32xf32> to vector<16x8xf32>
    %cst_42 = arith.constant dense<0.000000e+00> : vector<16x8xf32>
    %146 = tpu.matmul %144, %145, %cst_42 {dimension_numbers = #tpu.dot_dimension_numbers<[1], [0], [0], [1], [0, 0, 1, 1], [], []>} : vector<16x16xf32>, vector<16x8xf32>, vector<16x8xf32> -> vector<16x8xf32>
    %147 = tpu.concatenate %98, %114, %130, %146 in 1 : vector<16x8xf32>, vector<16x8xf32>, vector<16x8xf32>, vector<16x8xf32> -> vector<16x32xf32>
    %148 = vector.extract_strided_slice %71 {offsets = [0, 96], sizes = [32, 32], strides = [1, 1]} : vector<32x192xf32> to vector<32x32xf32>
    %cst_43 = arith.constant dense<0.000000e+00> : vector<16x32xf32>
    %149 = tpu.matmul %147, %148, %cst_43 {dimension_numbers = #tpu.dot_dimension_numbers<[1], [0], [0], [1], [0, 0, 1, 1], [], []>} : vector<16x32xf32>, vector<32x32xf32>, vector<16x32xf32> -> vector<16x32xf32>
    %150 = vector.extract_strided_slice %73 {offsets = [1, 0], sizes = [1, 32], strides = [1, 1]} : vector<8x128xf32> to vector<1x32xf32>
    %151 = vector.broadcast %150 : vector<1x32xf32> to vector<16x32xf32>
    %152 = arith.addf %149, %151 : vector<16x32xf32>
    %153 = arith.addf %46, %152 : vector<16x32xf32>
    %154 = vector.extract_strided_slice %73 {offsets = [2, 0], sizes = [1, 32], strides = [1, 1]} : vector<8x128xf32> to vector<1x32xf32>
    %155 = vector.extract_strided_slice %73 {offsets = [3, 0], sizes = [1, 32], strides = [1, 1]} : vector<8x128xf32> to vector<1x32xf32>
    %cst_44 = arith.constant dense<0.000000e+00> : vector<16xf32>
    %156 = vector.multi_reduction <add>, %153, %cst_44 [1] : vector<16x32xf32> to vector<16xf32>
    %157 = vector.shape_cast %156 : vector<16xf32> to vector<16x1xf32>
    %cst_45 = arith.constant 3.200000e+01 : f32
    %158 = vector.broadcast %cst_45 : f32 to vector<16x1xf32>
    %159 = arith.divf %157, %158 : vector<16x1xf32>
    %160 = vector.broadcast %159 : vector<16x1xf32> to vector<16x32xf32>
    %161 = arith.subf %153, %160 : vector<16x32xf32>
    %162 = arith.mulf %161, %161 : vector<16x32xf32>
    %cst_46 = arith.constant dense<0.000000e+00> : vector<16xf32>
    %163 = vector.multi_reduction <add>, %162, %cst_46 [1] : vector<16x32xf32> to vector<16xf32>
    %164 = vector.shape_cast %163 : vector<16xf32> to vector<16x1xf32>
    %cst_47 = arith.constant 3.200000e+01 : f32
    %165 = vector.broadcast %cst_47 : f32 to vector<16x1xf32>
    %166 = arith.divf %164, %165 : vector<16x1xf32>
    %167 = vector.broadcast %159 : vector<16x1xf32> to vector<16x32xf32>
    %168 = arith.subf %153, %167 : vector<16x32xf32>
    %cst_48 = arith.constant 9.99999996E-13 : f32
    %169 = vector.broadcast %cst_48 : f32 to vector<16x1xf32>
    %170 = arith.addf %166, %169 : vector<16x1xf32>
    %171 = math.rsqrt %170 : vector<16x1xf32>
    %172 = vector.broadcast %171 : vector<16x1xf32> to vector<16x32xf32>
    %173 = arith.mulf %168, %172 : vector<16x32xf32>
    %174 = vector.broadcast %154 : vector<1x32xf32> to vector<16x32xf32>
    %175 = arith.mulf %173, %174 : vector<16x32xf32>
    %176 = vector.broadcast %155 : vector<1x32xf32> to vector<16x32xf32>
    %177 = arith.addf %175, %176 : vector<16x32xf32>
    %178 = vector.extract_strided_slice %71 {offsets = [0, 128], sizes = [32, 64], strides = [1, 1]} : vector<32x192xf32> to vector<32x64xf32>
    %cst_49 = arith.constant dense<0.000000e+00> : vector<16x64xf32>
    %179 = tpu.matmul %177, %178, %cst_49 {dimension_numbers = #tpu.dot_dimension_numbers<[1], [0], [0], [1], [0, 0, 1, 1], [], []>} : vector<16x32xf32>, vector<32x64xf32>, vector<16x64xf32> -> vector<16x64xf32>
    %180 = vector.extract_strided_slice %73 {offsets = [4, 0], sizes = [1, 64], strides = [1, 1]} : vector<8x128xf32> to vector<1x64xf32>
    %181 = vector.broadcast %180 : vector<1x64xf32> to vector<16x64xf32>
    %182 = arith.addf %179, %181 : vector<16x64xf32>
    %cst_50 = arith.constant 5.000000e-01 : f32
    %183 = vector.broadcast %cst_50 : f32 to vector<16x64xf32>
    %184 = arith.mulf %183, %182 : vector<16x64xf32>
    %cst_51 = arith.constant 4.471500e-02 : f32
    %185 = vector.broadcast %cst_51 : f32 to vector<16x64xf32>
    %186 = arith.mulf %185, %182 : vector<16x64xf32>
    %187 = arith.mulf %186, %182 : vector<16x64xf32>
    %188 = arith.mulf %187, %182 : vector<16x64xf32>
    %189 = arith.addf %182, %188 : vector<16x64xf32>
    %cst_52 = arith.constant 0.797884583 : f32
    %190 = vector.broadcast %cst_52 : f32 to vector<16x64xf32>
    %191 = arith.mulf %190, %189 : vector<16x64xf32>
    %192 = math.tanh %191 : vector<16x64xf32>
    %cst_53 = arith.constant 1.000000e+00 : f32
    %193 = vector.broadcast %cst_53 : f32 to vector<16x64xf32>
    %194 = arith.addf %193, %192 : vector<16x64xf32>
    %195 = arith.mulf %184, %194 : vector<16x64xf32>
    %c0_54 = arith.constant 0 : index
    %c0_55 = arith.constant 0 : index
    %c0_56 = arith.constant 0 : index
    %196 = vector.load %arg4[%c0_54, %c0_55, %c0_56] : memref<2x64x32xf32, #tpu.memory_space<vmem>>, vector<1x64x32xf32>
    %197 = vector.shape_cast %196 : vector<1x64x32xf32> to vector<64x32xf32>
    %cst_57 = arith.constant dense<0.000000e+00> : vector<16x32xf32>
    %198 = tpu.matmul %195, %197, %cst_57 {dimension_numbers = #tpu.dot_dimension_numbers<[1], [0], [0], [1], [0, 0, 1, 1], [], []>} : vector<16x64xf32>, vector<64x32xf32>, vector<16x32xf32> -> vector<16x32xf32>
    %199 = vector.extract_strided_slice %73 {offsets = [5, 0], sizes = [1, 32], strides = [1, 1]} : vector<8x128xf32> to vector<1x32xf32>
    %200 = vector.broadcast %199 : vector<1x32xf32> to vector<16x32xf32>
    %201 = arith.addf %198, %200 : vector<16x32xf32>
    %202 = arith.addf %177, %201 : vector<16x32xf32>
    %203 = vector.extract_strided_slice %73 {offsets = [6, 0], sizes = [1, 32], strides = [1, 1]} : vector<8x128xf32> to vector<1x32xf32>
    %204 = vector.extract_strided_slice %73 {offsets = [7, 0], sizes = [1, 32], strides = [1, 1]} : vector<8x128xf32> to vector<1x32xf32>
    %cst_58 = arith.constant dense<0.000000e+00> : vector<16xf32>
    %205 = vector.multi_reduction <add>, %202, %cst_58 [1] : vector<16x32xf32> to vector<16xf32>
    %206 = vector.shape_cast %205 : vector<16xf32> to vector<16x1xf32>
    %cst_59 = arith.constant 3.200000e+01 : f32
    %207 = vector.broadcast %cst_59 : f32 to vector<16x1xf32>
    %208 = arith.divf %206, %207 : vector<16x1xf32>
    %209 = vector.broadcast %208 : vector<16x1xf32> to vector<16x32xf32>
    %210 = arith.subf %202, %209 : vector<16x32xf32>
    %211 = arith.mulf %210, %210 : vector<16x32xf32>
    %cst_60 = arith.constant dense<0.000000e+00> : vector<16xf32>
    %212 = vector.multi_reduction <add>, %211, %cst_60 [1] : vector<16x32xf32> to vector<16xf32>
    %213 = vector.shape_cast %212 : vector<16xf32> to vector<16x1xf32>
    %cst_61 = arith.constant 3.200000e+01 : f32
    %214 = vector.broadcast %cst_61 : f32 to vector<16x1xf32>
    %215 = arith.divf %213, %214 : vector<16x1xf32>
    %216 = vector.broadcast %208 : vector<16x1xf32> to vector<16x32xf32>
    %217 = arith.subf %202, %216 : vector<16x32xf32>
    %cst_62 = arith.constant 9.99999996E-13 : f32
    %218 = vector.broadcast %cst_62 : f32 to vector<16x1xf32>
    %219 = arith.addf %215, %218 : vector<16x1xf32>
    %220 = math.rsqrt %219 : vector<16x1xf32>
    %221 = vector.broadcast %220 : vector<16x1xf32> to vector<16x32xf32>
    %222 = arith.mulf %217, %221 : vector<16x32xf32>
    %223 = vector.broadcast %203 : vector<1x32xf32> to vector<16x32xf32>
    %224 = arith.mulf %222, %223 : vector<16x32xf32>
    %225 = vector.broadcast %204 : vector<1x32xf32> to vector<16x32xf32>
    %226 = arith.addf %224, %225 : vector<16x32xf32>
    %c1 = arith.constant 1 : index
    %c0_63 = arith.constant 0 : index
    %c0_64 = arith.constant 0 : index
    %227 = vector.load %arg3[%c1, %c0_63, %c0_64] : memref<2x32x192xf32, #tpu.memory_space<vmem>>, vector<1x32x192xf32>
    %228 = vector.shape_cast %227 : vector<1x32x192xf32> to vector<32x192xf32>
    %c1_65 = arith.constant 1 : index
    %c0_66 = arith.constant 0 : index
    %c0_67 = arith.constant 0 : index
    %229 = vector.load %arg5[%c1_65, %c0_66, %c0_67] : memref<2x8x128xf32, #tpu.memory_space<vmem>>, vector<1x8x128xf32>
    %230 = vector.shape_cast %229 : vector<1x8x128xf32> to vector<8x128xf32>
    %231 = vector.extract_strided_slice %228 {offsets = [0, 0], sizes = [32, 96], strides = [1, 1]} : vector<32x192xf32> to vector<32x96xf32>
    %cst_68 = arith.constant dense<0.000000e+00> : vector<16x96xf32>
    %232 = tpu.matmul %226, %231, %cst_68 {dimension_numbers = #tpu.dot_dimension_numbers<[1], [0], [0], [1], [0, 0, 1, 1], [], []>} : vector<16x32xf32>, vector<32x96xf32>, vector<16x96xf32> -> vector<16x96xf32>
    %233 = vector.extract_strided_slice %230 {offsets = [0, 0], sizes = [1, 96], strides = [1, 1]} : vector<8x128xf32> to vector<1x96xf32>
    %234 = vector.broadcast %233 : vector<1x96xf32> to vector<16x96xf32>
    %235 = arith.addf %232, %234 : vector<16x96xf32>
    %236 = vector.extract_strided_slice %235 {offsets = [0, 0], sizes = [16, 32], strides = [1, 1]} : vector<16x96xf32> to vector<16x32xf32>
    %237 = vector.extract_strided_slice %235 {offsets = [0, 32], sizes = [16, 32], strides = [1, 1]} : vector<16x96xf32> to vector<16x32xf32>
    %238 = vector.extract_strided_slice %235 {offsets = [0, 64], sizes = [16, 32], strides = [1, 1]} : vector<16x96xf32> to vector<16x32xf32>
    %239 = tpu.transpose %237, [1, 0] : vector<16x32xf32> -> vector<32x16xf32>
    %240 = vector.extract_strided_slice %236 {offsets = [0, 0], sizes = [16, 8], strides = [1, 1]} : vector<16x32xf32> to vector<16x8xf32>
    %241 = vector.extract_strided_slice %239 {offsets = [0, 0], sizes = [8, 16], strides = [1, 1]} : vector<32x16xf32> to vector<8x16xf32>
    %cst_69 = arith.constant dense<0.000000e+00> : vector<16x16xf32>
    %242 = tpu.matmul %240, %241, %cst_69 {dimension_numbers = #tpu.dot_dimension_numbers<[1], [0], [0], [1], [0, 0, 1, 1], [], []>} : vector<16x8xf32>, vector<8x16xf32>, vector<16x16xf32> -> vector<16x16xf32>
    %243 = arith.addf %242, %69 : vector<16x16xf32>
    %cst_70 = arith.constant dense<0xFF800000> : vector<16xf32>
    %244 = vector.multi_reduction <maximumf>, %243, %cst_70 [1] : vector<16x16xf32> to vector<16xf32>
    %245 = vector.shape_cast %244 : vector<16xf32> to vector<16x1xf32>
    %246 = vector.broadcast %245 : vector<16x1xf32> to vector<16x16xf32>
    %247 = arith.subf %243, %246 : vector<16x16xf32>
    %248 = math.exp %247 : vector<16x16xf32>
    %cst_71 = arith.constant dense<0.000000e+00> : vector<16xf32>
    %249 = vector.multi_reduction <add>, %248, %cst_71 [1] : vector<16x16xf32> to vector<16xf32>
    %250 = vector.shape_cast %249 : vector<16xf32> to vector<16x1xf32>
    %251 = tpu.reciprocal %250 {approx = true} : vector<16x1xf32> -> vector<16x1xf32>
    %252 = vector.broadcast %251 : vector<16x1xf32> to vector<16x16xf32>
    %253 = arith.mulf %248, %252 : vector<16x16xf32>
    %254 = vector.extract_strided_slice %238 {offsets = [0, 0], sizes = [16, 8], strides = [1, 1]} : vector<16x32xf32> to vector<16x8xf32>
    %cst_72 = arith.constant dense<0.000000e+00> : vector<16x8xf32>
    %255 = tpu.matmul %253, %254, %cst_72 {dimension_numbers = #tpu.dot_dimension_numbers<[1], [0], [0], [1], [0, 0, 1, 1], [], []>} : vector<16x16xf32>, vector<16x8xf32>, vector<16x8xf32> -> vector<16x8xf32>
    %256 = vector.extract_strided_slice %236 {offsets = [0, 8], sizes = [16, 8], strides = [1, 1]} : vector<16x32xf32> to vector<16x8xf32>
    %257 = vector.extract_strided_slice %239 {offsets = [8, 0], sizes = [8, 16], strides = [1, 1]} : vector<32x16xf32> to vector<8x16xf32>
    %cst_73 = arith.constant dense<0.000000e+00> : vector<16x16xf32>
    %258 = tpu.matmul %256, %257, %cst_73 {dimension_numbers = #tpu.dot_dimension_numbers<[1], [0], [0], [1], [0, 0, 1, 1], [], []>} : vector<16x8xf32>, vector<8x16xf32>, vector<16x16xf32> -> vector<16x16xf32>
    %259 = arith.addf %258, %69 : vector<16x16xf32>
    %cst_74 = arith.constant dense<0xFF800000> : vector<16xf32>
    %260 = vector.multi_reduction <maximumf>, %259, %cst_74 [1] : vector<16x16xf32> to vector<16xf32>
    %261 = vector.shape_cast %260 : vector<16xf32> to vector<16x1xf32>
    %262 = vector.broadcast %261 : vector<16x1xf32> to vector<16x16xf32>
    %263 = arith.subf %259, %262 : vector<16x16xf32>
    %264 = math.exp %263 : vector<16x16xf32>
    %cst_75 = arith.constant dense<0.000000e+00> : vector<16xf32>
    %265 = vector.multi_reduction <add>, %264, %cst_75 [1] : vector<16x16xf32> to vector<16xf32>
    %266 = vector.shape_cast %265 : vector<16xf32> to vector<16x1xf32>
    %267 = tpu.reciprocal %266 {approx = true} : vector<16x1xf32> -> vector<16x1xf32>
    %268 = vector.broadcast %267 : vector<16x1xf32> to vector<16x16xf32>
    %269 = arith.mulf %264, %268 : vector<16x16xf32>
    %270 = vector.extract_strided_slice %238 {offsets = [0, 8], sizes = [16, 8], strides = [1, 1]} : vector<16x32xf32> to vector<16x8xf32>
    %cst_76 = arith.constant dense<0.000000e+00> : vector<16x8xf32>
    %271 = tpu.matmul %269, %270, %cst_76 {dimension_numbers = #tpu.dot_dimension_numbers<[1], [0], [0], [1], [0, 0, 1, 1], [], []>} : vector<16x16xf32>, vector<16x8xf32>, vector<16x8xf32> -> vector<16x8xf32>
    %272 = vector.extract_strided_slice %236 {offsets = [0, 16], sizes = [16, 8], strides = [1, 1]} : vector<16x32xf32> to vector<16x8xf32>
    %273 = vector.extract_strided_slice %239 {offsets = [16, 0], sizes = [8, 16], strides = [1, 1]} : vector<32x16xf32> to vector<8x16xf32>
    %cst_77 = arith.constant dense<0.000000e+00> : vector<16x16xf32>
    %274 = tpu.matmul %272, %273, %cst_77 {dimension_numbers = #tpu.dot_dimension_numbers<[1], [0], [0], [1], [0, 0, 1, 1], [], []>} : vector<16x8xf32>, vector<8x16xf32>, vector<16x16xf32> -> vector<16x16xf32>
    %275 = arith.addf %274, %69 : vector<16x16xf32>
    %cst_78 = arith.constant dense<0xFF800000> : vector<16xf32>
    %276 = vector.multi_reduction <maximumf>, %275, %cst_78 [1] : vector<16x16xf32> to vector<16xf32>
    %277 = vector.shape_cast %276 : vector<16xf32> to vector<16x1xf32>
    %278 = vector.broadcast %277 : vector<16x1xf32> to vector<16x16xf32>
    %279 = arith.subf %275, %278 : vector<16x16xf32>
    %280 = math.exp %279 : vector<16x16xf32>
    %cst_79 = arith.constant dense<0.000000e+00> : vector<16xf32>
    %281 = vector.multi_reduction <add>, %280, %cst_79 [1] : vector<16x16xf32> to vector<16xf32>
    %282 = vector.shape_cast %281 : vector<16xf32> to vector<16x1xf32>
    %283 = tpu.reciprocal %282 {approx = true} : vector<16x1xf32> -> vector<16x1xf32>
    %284 = vector.broadcast %283 : vector<16x1xf32> to vector<16x16xf32>
    %285 = arith.mulf %280, %284 : vector<16x16xf32>
    %286 = vector.extract_strided_slice %238 {offsets = [0, 16], sizes = [16, 8], strides = [1, 1]} : vector<16x32xf32> to vector<16x8xf32>
    %cst_80 = arith.constant dense<0.000000e+00> : vector<16x8xf32>
    %287 = tpu.matmul %285, %286, %cst_80 {dimension_numbers = #tpu.dot_dimension_numbers<[1], [0], [0], [1], [0, 0, 1, 1], [], []>} : vector<16x16xf32>, vector<16x8xf32>, vector<16x8xf32> -> vector<16x8xf32>
    %288 = vector.extract_strided_slice %236 {offsets = [0, 24], sizes = [16, 8], strides = [1, 1]} : vector<16x32xf32> to vector<16x8xf32>
    %289 = vector.extract_strided_slice %239 {offsets = [24, 0], sizes = [8, 16], strides = [1, 1]} : vector<32x16xf32> to vector<8x16xf32>
    %cst_81 = arith.constant dense<0.000000e+00> : vector<16x16xf32>
    %290 = tpu.matmul %288, %289, %cst_81 {dimension_numbers = #tpu.dot_dimension_numbers<[1], [0], [0], [1], [0, 0, 1, 1], [], []>} : vector<16x8xf32>, vector<8x16xf32>, vector<16x16xf32> -> vector<16x16xf32>
    %291 = arith.addf %290, %69 : vector<16x16xf32>
    %cst_82 = arith.constant dense<0xFF800000> : vector<16xf32>
    %292 = vector.multi_reduction <maximumf>, %291, %cst_82 [1] : vector<16x16xf32> to vector<16xf32>
    %293 = vector.shape_cast %292 : vector<16xf32> to vector<16x1xf32>
    %294 = vector.broadcast %293 : vector<16x1xf32> to vector<16x16xf32>
    %295 = arith.subf %291, %294 : vector<16x16xf32>
    %296 = math.exp %295 : vector<16x16xf32>
    %cst_83 = arith.constant dense<0.000000e+00> : vector<16xf32>
    %297 = vector.multi_reduction <add>, %296, %cst_83 [1] : vector<16x16xf32> to vector<16xf32>
    %298 = vector.shape_cast %297 : vector<16xf32> to vector<16x1xf32>
    %299 = tpu.reciprocal %298 {approx = true} : vector<16x1xf32> -> vector<16x1xf32>
    %300 = vector.broadcast %299 : vector<16x1xf32> to vector<16x16xf32>
    %301 = arith.mulf %296, %300 : vector<16x16xf32>
    %302 = vector.extract_strided_slice %238 {offsets = [0, 24], sizes = [16, 8], strides = [1, 1]} : vector<16x32xf32> to vector<16x8xf32>
    %cst_84 = arith.constant dense<0.000000e+00> : vector<16x8xf32>
    %303 = tpu.matmul %301, %302, %cst_84 {dimension_numbers = #tpu.dot_dimension_numbers<[1], [0], [0], [1], [0, 0, 1, 1], [], []>} : vector<16x16xf32>, vector<16x8xf32>, vector<16x8xf32> -> vector<16x8xf32>
    %304 = tpu.concatenate %255, %271, %287, %303 in 1 : vector<16x8xf32>, vector<16x8xf32>, vector<16x8xf32>, vector<16x8xf32> -> vector<16x32xf32>
    %305 = vector.extract_strided_slice %228 {offsets = [0, 96], sizes = [32, 32], strides = [1, 1]} : vector<32x192xf32> to vector<32x32xf32>
    %cst_85 = arith.constant dense<0.000000e+00> : vector<16x32xf32>
    %306 = tpu.matmul %304, %305, %cst_85 {dimension_numbers = #tpu.dot_dimension_numbers<[1], [0], [0], [1], [0, 0, 1, 1], [], []>} : vector<16x32xf32>, vector<32x32xf32>, vector<16x32xf32> -> vector<16x32xf32>
    %307 = vector.extract_strided_slice %230 {offsets = [1, 0], sizes = [1, 32], strides = [1, 1]} : vector<8x128xf32> to vector<1x32xf32>
    %308 = vector.broadcast %307 : vector<1x32xf32> to vector<16x32xf32>
    %309 = arith.addf %306, %308 : vector<16x32xf32>
    %310 = arith.addf %226, %309 : vector<16x32xf32>
    %311 = vector.extract_strided_slice %230 {offsets = [2, 0], sizes = [1, 32], strides = [1, 1]} : vector<8x128xf32> to vector<1x32xf32>
    %312 = vector.extract_strided_slice %230 {offsets = [3, 0], sizes = [1, 32], strides = [1, 1]} : vector<8x128xf32> to vector<1x32xf32>
    %cst_86 = arith.constant dense<0.000000e+00> : vector<16xf32>
    %313 = vector.multi_reduction <add>, %310, %cst_86 [1] : vector<16x32xf32> to vector<16xf32>
    %314 = vector.shape_cast %313 : vector<16xf32> to vector<16x1xf32>
    %cst_87 = arith.constant 3.200000e+01 : f32
    %315 = vector.broadcast %cst_87 : f32 to vector<16x1xf32>
    %316 = arith.divf %314, %315 : vector<16x1xf32>
    %317 = vector.broadcast %316 : vector<16x1xf32> to vector<16x32xf32>
    %318 = arith.subf %310, %317 : vector<16x32xf32>
    %319 = arith.mulf %318, %318 : vector<16x32xf32>
    %cst_88 = arith.constant dense<0.000000e+00> : vector<16xf32>
    %320 = vector.multi_reduction <add>, %319, %cst_88 [1] : vector<16x32xf32> to vector<16xf32>
    %321 = vector.shape_cast %320 : vector<16xf32> to vector<16x1xf32>
    %cst_89 = arith.constant 3.200000e+01 : f32
    %322 = vector.broadcast %cst_89 : f32 to vector<16x1xf32>
    %323 = arith.divf %321, %322 : vector<16x1xf32>
    %324 = vector.broadcast %316 : vector<16x1xf32> to vector<16x32xf32>
    %325 = arith.subf %310, %324 : vector<16x32xf32>
    %cst_90 = arith.constant 9.99999996E-13 : f32
    %326 = vector.broadcast %cst_90 : f32 to vector<16x1xf32>
    %327 = arith.addf %323, %326 : vector<16x1xf32>
    %328 = math.rsqrt %327 : vector<16x1xf32>
    %329 = vector.broadcast %328 : vector<16x1xf32> to vector<16x32xf32>
    %330 = arith.mulf %325, %329 : vector<16x32xf32>
    %331 = vector.broadcast %311 : vector<1x32xf32> to vector<16x32xf32>
    %332 = arith.mulf %330, %331 : vector<16x32xf32>
    %333 = vector.broadcast %312 : vector<1x32xf32> to vector<16x32xf32>
    %334 = arith.addf %332, %333 : vector<16x32xf32>
    %335 = vector.extract_strided_slice %228 {offsets = [0, 128], sizes = [32, 64], strides = [1, 1]} : vector<32x192xf32> to vector<32x64xf32>
    %cst_91 = arith.constant dense<0.000000e+00> : vector<16x64xf32>
    %336 = tpu.matmul %334, %335, %cst_91 {dimension_numbers = #tpu.dot_dimension_numbers<[1], [0], [0], [1], [0, 0, 1, 1], [], []>} : vector<16x32xf32>, vector<32x64xf32>, vector<16x64xf32> -> vector<16x64xf32>
    %337 = vector.extract_strided_slice %230 {offsets = [4, 0], sizes = [1, 64], strides = [1, 1]} : vector<8x128xf32> to vector<1x64xf32>
    %338 = vector.broadcast %337 : vector<1x64xf32> to vector<16x64xf32>
    %339 = arith.addf %336, %338 : vector<16x64xf32>
    %cst_92 = arith.constant 5.000000e-01 : f32
    %340 = vector.broadcast %cst_92 : f32 to vector<16x64xf32>
    %341 = arith.mulf %340, %339 : vector<16x64xf32>
    %cst_93 = arith.constant 4.471500e-02 : f32
    %342 = vector.broadcast %cst_93 : f32 to vector<16x64xf32>
    %343 = arith.mulf %342, %339 : vector<16x64xf32>
    %344 = arith.mulf %343, %339 : vector<16x64xf32>
    %345 = arith.mulf %344, %339 : vector<16x64xf32>
    %346 = arith.addf %339, %345 : vector<16x64xf32>
    %cst_94 = arith.constant 0.797884583 : f32
    %347 = vector.broadcast %cst_94 : f32 to vector<16x64xf32>
    %348 = arith.mulf %347, %346 : vector<16x64xf32>
    %349 = math.tanh %348 : vector<16x64xf32>
    %cst_95 = arith.constant 1.000000e+00 : f32
    %350 = vector.broadcast %cst_95 : f32 to vector<16x64xf32>
    %351 = arith.addf %350, %349 : vector<16x64xf32>
    %352 = arith.mulf %341, %351 : vector<16x64xf32>
    %c1_96 = arith.constant 1 : index
    %c0_97 = arith.constant 0 : index
    %c0_98 = arith.constant 0 : index
    %353 = vector.load %arg4[%c1_96, %c0_97, %c0_98] : memref<2x64x32xf32, #tpu.memory_space<vmem>>, vector<1x64x32xf32>
    %354 = vector.shape_cast %353 : vector<1x64x32xf32> to vector<64x32xf32>
    %cst_99 = arith.constant dense<0.000000e+00> : vector<16x32xf32>
    %355 = tpu.matmul %352, %354, %cst_99 {dimension_numbers = #tpu.dot_dimension_numbers<[1], [0], [0], [1], [0, 0, 1, 1], [], []>} : vector<16x64xf32>, vector<64x32xf32>, vector<16x32xf32> -> vector<16x32xf32>
    %356 = vector.extract_strided_slice %230 {offsets = [5, 0], sizes = [1, 32], strides = [1, 1]} : vector<8x128xf32> to vector<1x32xf32>
    %357 = vector.broadcast %356 : vector<1x32xf32> to vector<16x32xf32>
    %358 = arith.addf %355, %357 : vector<16x32xf32>
    %359 = arith.addf %334, %358 : vector<16x32xf32>
    %360 = vector.extract_strided_slice %230 {offsets = [6, 0], sizes = [1, 32], strides = [1, 1]} : vector<8x128xf32> to vector<1x32xf32>
    %361 = vector.extract_strided_slice %230 {offsets = [7, 0], sizes = [1, 32], strides = [1, 1]} : vector<8x128xf32> to vector<1x32xf32>
    %cst_100 = arith.constant dense<0.000000e+00> : vector<16xf32>
    %362 = vector.multi_reduction <add>, %359, %cst_100 [1] : vector<16x32xf32> to vector<16xf32>
    %363 = vector.shape_cast %362 : vector<16xf32> to vector<16x1xf32>
    %cst_101 = arith.constant 3.200000e+01 : f32
    %364 = vector.broadcast %cst_101 : f32 to vector<16x1xf32>
    %365 = arith.divf %363, %364 : vector<16x1xf32>
    %366 = vector.broadcast %365 : vector<16x1xf32> to vector<16x32xf32>
    %367 = arith.subf %359, %366 : vector<16x32xf32>
    %368 = arith.mulf %367, %367 : vector<16x32xf32>
    %cst_102 = arith.constant dense<0.000000e+00> : vector<16xf32>
    %369 = vector.multi_reduction <add>, %368, %cst_102 [1] : vector<16x32xf32> to vector<16xf32>
    %370 = vector.shape_cast %369 : vector<16xf32> to vector<16x1xf32>
    %cst_103 = arith.constant 3.200000e+01 : f32
    %371 = vector.broadcast %cst_103 : f32 to vector<16x1xf32>
    %372 = arith.divf %370, %371 : vector<16x1xf32>
    %373 = vector.broadcast %365 : vector<16x1xf32> to vector<16x32xf32>
    %374 = arith.subf %359, %373 : vector<16x32xf32>
    %cst_104 = arith.constant 9.99999996E-13 : f32
    %375 = vector.broadcast %cst_104 : f32 to vector<16x1xf32>
    %376 = arith.addf %372, %375 : vector<16x1xf32>
    %377 = math.rsqrt %376 : vector<16x1xf32>
    %378 = vector.broadcast %377 : vector<16x1xf32> to vector<16x32xf32>
    %379 = arith.mulf %374, %378 : vector<16x32xf32>
    %380 = vector.broadcast %360 : vector<1x32xf32> to vector<16x32xf32>
    %381 = arith.mulf %379, %380 : vector<16x32xf32>
    %382 = vector.broadcast %361 : vector<1x32xf32> to vector<16x32xf32>
    %383 = arith.addf %381, %382 : vector<16x32xf32>
    %c80 = arith.constant 80 : index
    %c0_105 = arith.constant 0 : index
    %384 = vector.load %arg2[%c80, %c0_105] : memref<120x128xf32, #tpu.memory_space<vmem>>, vector<32x128xf32>
    %cst_106 = arith.constant dense<0.000000e+00> : vector<16x128xf32>
    %385 = tpu.matmul %383, %384, %cst_106 {dimension_numbers = #tpu.dot_dimension_numbers<[1], [0], [0], [1], [0, 0, 1, 1], [], []>} : vector<16x32xf32>, vector<32x128xf32>, vector<16x128xf32> -> vector<16x128xf32>
    %c114 = arith.constant 114 : index
    %c0_107 = arith.constant 0 : index
    %386 = vector.load %arg2[%c114, %c0_107] : memref<120x128xf32, #tpu.memory_space<vmem>>, vector<1x128xf32>
    %387 = vector.broadcast %386 : vector<1x128xf32> to vector<16x128xf32>
    %388 = arith.addf %385, %387 : vector<16x128xf32>
    %c0_108 = arith.constant 0 : index
    %c0_109 = arith.constant 0 : index
    %389 = vector.load %arg6[%c0_108, %c0_109] : memref<16x128xf32, #tpu.memory_space<vmem>>, vector<16x128xf32>
    tpu.vector_store %arg6[%c0_108, %c0_109], %388 {strides = array<i32>} : memref<16x128xf32, #tpu.memory_space<vmem>>, vector<16x128xf32>,
    return
  }
}

</mosaic_0001>

<llo_original>
// kernel: simple_bert_classifier.1
$region0: #{simple_bert_classifier.1}
  #allocation0 [shape = 'u32[]', space=smem, size = 0x4, offset = 0x4, fixed_abs, tag = 'smem constant byte address 0x4 - core index']
  #allocation1 [shape = 'u32[72,128]{1,0:T(1,128)}', space=vmem, size = 0x9000, scoped, tag = 'internal scratch']
  %s0 = inlined_call_operand.vmem [shape: s32[16,1], index: 0, kind: input, shape index: {}]
  %s1 = inlined_call_operand.vmem [shape: s32[1,16], index: 1, kind: input, shape index: {}]
  %s2 = inlined_call_operand.hbm [shape: f32[120,128], index: 2, kind: input, shape index: {}]
  %s3 = inlined_call_operand.vmem [shape: f32[2,32,192], index: 3, kind: input, shape index: {}]
  %s4 = inlined_call_operand.vmem [shape: f32[2,64,32], index: 4, kind: input, shape index: {}]
  %s5 = inlined_call_operand.vmem [shape: f32[2,8,128], index: 5, kind: input, shape index: {}]
  %s6 = inlined_call_operand.vmem [shape: f32[16,128], index: 6, kind: output, shape index: {}]
  %s7 = sld [smem:[#allocation0]]
  $region38: #{simple_bert_classifier.1} parent=0
    _
  %s9 = ssub.s32 1, %s7
  %s10 = scalar_select 0, %s9, %s7
  $region1: #{simple_bert_classifier.1} parent=0
    #allocation2 [shape = 'u8[61440]{0}', space=vmem, size = 0xf000, scoped, tag = 'input window, operand 2, single buffered']
    #allocation3 [shape = 's32[1]{0}', space=sflag, size = 0x4, scoped, tag = 'scoped memory for simple_bert_classifier.1']
    %11 = vsyncpa [#allocation3], 0
    // Predicated region
    $region2: #{simple_bert_classifier.1} parent=1 // pred_check
      _
    $region3: #{simple_bert_classifier.1} parent=1 // pred_check_branch
      %13 = sbr.rel (0) target = $region5
    $region4: #{simple_bert_classifier.1} parent=1 // pred_region
      _
    $region5: #{simple_bert_classifier.1} parent=1 // pred_fallthru
      _
    // Predicated region
    $region6: #{simple_bert_classifier.1} parent=1 // pred_check
      _
    $region7: #{simple_bert_classifier.1} parent=1 // pred_check_branch
      %15 = sbr.rel (0) target = $region9
    $region8: #{simple_bert_classifier.1} parent=1 // pred_region
      _
    $region9: #{simple_bert_classifier.1} parent=1 // pred_fallthru
      _
    // Predicated region
    $region10: #{simple_bert_classifier.1} parent=1 // pred_check
      _
    $region11: #{simple_bert_classifier.1} parent=1 // pred_check_branch
      %17 = sbr.rel (0) target = $region13
    $region12: #{simple_bert_classifier.1} parent=1 // pred_region
      %19 = vsyncadd [#allocation3], 0
      %s20 = sshll.u32 %s2, 4
      %s21 = int_to_ptr.hbm [resolvable:$true] %s20
      %s22 = sshll.u32 [#allocation2], 4
      %s23 = int_to_ptr.vmem [resolvable:$true] %s22
      %28 = dma.hbm_to_vmem [thread:$0]  %s21, 1920, %s23, [#allocation3], 128, 128, 8
    $region13: #{simple_bert_classifier.1} parent=1 // pred_fallthru
      _
    // Predicated region
    $region14: #{simple_bert_classifier.1} parent=1 // pred_check
      _
    $region15: #{simple_bert_classifier.1} parent=1 // pred_check_branch
      %30 = sbr.rel (0) target = $region17
    $region16: #{simple_bert_classifier.1} parent=1 // pred_region
      _
    $region17: #{simple_bert_classifier.1} parent=1 // pred_fallthru
      _
    // Predicated region
    $region18: #{simple_bert_classifier.1} parent=1 // pred_check
      _
    $region19: #{simple_bert_classifier.1} parent=1 // pred_check_branch
      %32 = sbr.rel (0) target = $region21
    $region20: #{simple_bert_classifier.1} parent=1 // pred_region
      _
    $region21: #{simple_bert_classifier.1} parent=1 // pred_fallthru
      _
    // Predicated region
    $region22: #{simple_bert_classifier.1} parent=1 // pred_check
      _
    $region23: #{simple_bert_classifier.1} parent=1 // pred_check_branch
      %34 = sbr.rel (0) target = $region25
    $region24: #{simple_bert_classifier.1} parent=1 // pred_region
      _
    $region25: #{simple_bert_classifier.1} parent=1 // pred_fallthru
      _
    // Predicated region
    $region26: #{simple_bert_classifier.1} parent=1 // pred_check
      _
    $region27: #{simple_bert_classifier.1} parent=1 // pred_check_branch
      %36 = sbr.rel (0) target = $region29
    $region28: #{simple_bert_classifier.1} parent=1 // pred_region
      %38 = dma.done [#allocation3], 1920
    $region29: #{simple_bert_classifier.1} parent=1 // pred_fallthru
      _
    %v39 = vld [vmem:[%s0] sm:$0xff]
    %v40 = vld [vmem:[%s0 + $0x8] sm:$0xff]
    %v41 = vlaneseq
    %v42 = vand.u32 %v41, 127
    %v43 = vlaneseq
    %v44 = vshrl.u32 %v43, 7
    %v45 = vadd.s32 %v44, 8
    %v46 = vcvt.s32.f32 %v44
    %v47 = vcvt.s32.f32 %v45
    %v48 = vadd.f32 %v46, 0.5
    %v49 = vadd.f32 %v47, 0.5
    %v50 = vmul.f32 %v48, 0.125
    %v51 = vmul.f32 %v49, 0.125
    %v52 = vfloor.f32 %v50
    %v53 = vfloor.f32 %v51
    %v54 = vcvt.f32.s32.to.zero.pseudo %v52
    %v55 = vcvt.f32.s32.to.zero.pseudo %v53
    %v56 = vmul.u32 %v54, 8
    %v57 = vmul.u32 %v55, 8
    %v58 = vsub.s32 %v44, %v56
    %v59 = vsub.s32 %v45, %v57
    %60 = vset.pattern.permute.xlu0 0
    %61 = vperm.xlu0 %60, %v39
    %v62 = vpop.permute.xlu0 %61
    %63 = vset.pattern.permute.xlu0 0
    %64 = vperm.xlu0 %63, %v40
    %v65 = vpop.permute.xlu0 %64
    %vm66 = vcmp.eq.s32.totalorder %v42, %v62
    %vm67 = vcmp.eq.s32.totalorder %v42, %v65
    %v68 = vadd.s32 %v58, 64
    %v69 = vadd.s32 %v59, 64
    %vm70 = vcmp.eq.s32.totalorder %v42, %v68
    %vm71 = vcmp.eq.s32.totalorder %v42, %v69
    %vm72 = vmor %vm66, %vm70
    %vm73 = vmor %vm67, %vm71
    %v74 = vsel %vm72, 1, 0
    %v75 = vsel %vm73, 1, 0
    %v76 = vcvt.s32.f32 %v74
    %v77 = vcvt.s32.f32 %v75
    %v78 = vld [vmem:[#allocation2] sm:$0xff]
    %v79 = vld [vmem:[#allocation2 + $0x8] sm:$0xff]
    %v80 = vld [vmem:[#allocation2 + $0x10] sm:$0xff]
    %v81 = vld [vmem:[#allocation2 + $0x18] sm:$0xff]
    %v82 = vld [vmem:[#allocation2 + $0x20] sm:$0xff]
    %v83 = vld [vmem:[#allocation2 + $0x28] sm:$0xff]
    %v84 = vld [vmem:[#allocation2 + $0x30] sm:$0xff]
    %v85 = vld [vmem:[#allocation2 + $0x38] sm:$0xff]
    %v86 = vld [vmem:[#allocation2 + $0x40] sm:$0xff]
    %v87 = vld [vmem:[#allocation2 + $0x48] sm:$0xff]
    %vm88 = vcmask 654336
    %v90 = vsel %vm88, %v76, 0
    %v93 = vsel %vm88, %v77, 0
    %95 = vmatpush.msra.mxu0 0.0
    %96 = vmatpush.msra.mxu0 0.0
    %97 = vmatpush.msra.mxu0 0.0
    %98 = vmatpush.msra.mxu0 0.0
    %99 = vmatpush.msra.mxu0 0.0
    %100 = vmatpush.msra.mxu0 0.0
    %101 = vmatpush.msra.mxu0 %v87
    %102 = vmatpush.msra.mxu0 %v86
    %103 = vmatpush.msra.mxu0 %v85
    %104 = vmatpush.msra.mxu0 %v84
    %105 = vmatpush.msra.mxu0 %v83
    %106 = vmatpush.msra.mxu0 %v82
    %107 = vmatpush.msra.mxu0 %v81
    %108 = vmatpush.msra.mxu0 %v80
    %109 = vmatpush.msra.mxu0 %v79
    %110 = vmatpush.msra.mxu0 %v78
    %111 = vmatmul.f32.gmra.mxu0 %v90
    %v112 = vpop.f32.mrf.mxu0
    %v113 = vadd.f32 0.0, %v112
    %114 = vmatmul.f32.gmra.mxu0 %v93
    %v115 = vpop.f32.mrf.mxu0
    %v116 = vadd.f32 0.0, %v115
    %117 = vdwg.mxu0
    %v118 = vld [vmem:[#allocation2 + $0x70] sm:$0x1]
    %v119 = vld [vmem:[#allocation2 + $0x71] sm:$0x1]
    %vm120 = vcmask 261120
    %v121 = vsel %vm120, %v113, 0.0
    %122 = vadd.xlane.f32.xlu0 %v121
    %v123 = vpop.xlane.xlu0 %122
    %v124 = vsel %vm120, %v116, 0.0
    %125 = vadd.xlane.f32.xlu0 %v124
    %v126 = vpop.xlane.xlu0 %125
    %v127 = vrcp.pop 32.0
    %v128 = vmul.f32 32.0, %v127
    %v129 = vsub.f32 1.0, %v128
    %v130 = vmul.f32 %v127, %v129
    %v131 = vadd.f32 %v127, %v130
    %vm132 = vweird.f32 %v127
    %v133 = vsel %vm132, %v127, %v131
    %v134 = vmul.f32 %v123, %v133
    %v135 = vmul.f32 %v126, %v133
    %v136 = vsub.f32 %v113, %v134
    %v137 = vsub.f32 %v116, %v135
    %v138 = vmul.f32 %v136, %v136
    %v139 = vmul.f32 %v137, %v137
    %v140 = vsel %vm120, %v138, 0.0
    %141 = vadd.xlane.f32.xlu0 %v140
    %v142 = vpop.xlane.xlu0 %141
    %v143 = vsel %vm120, %v139, 0.0
    %144 = vadd.xlane.f32.xlu0 %v143
    %v145 = vpop.xlane.xlu0 %144
    %v146 = vmul.f32 %v142, %v133
    %v147 = vmul.f32 %v145, %v133
    %v148 = vadd.f32 %v146, 1e-12
    %v149 = vadd.f32 %v147, 1e-12
    %v150 = vrsqrt.pop %v148
    %v151 = vmul.f32 %v150, %v148
    %v152 = vmul.f32 %v151, %v150
    %v153 = vmul.f32 0.5, %v152
    %v154 = vsub.f32 1.5, %v153
    %v155 = vmul.f32 %v150, %v154
    %vm156 = vweird.f32 %v148
    %vm157 = vweird.f32 %v150
    %vm158 = vmor %vm156, %vm157
    %v159 = vsel %vm158, %v150, %v155
    %v160 = vrsqrt.pop %v149
    %v161 = vmul.f32 %v160, %v149
    %v162 = vmul.f32 %v161, %v160
    %v163 = vmul.f32 0.5, %v162
    %v164 = vsub.f32 1.5, %v163
    %v165 = vmul.f32 %v160, %v164
    %vm166 = vweird.f32 %v149
    %vm167 = vweird.f32 %v160
    %vm168 = vmor %vm166, %vm167
    %v169 = vsel %vm168, %v160, %v165
    %v170 = vmul.f32 %v136, %v159
    %v171 = vmul.f32 %v137, %v169
    %v172 = vperm.slane %v118, 0
    %v173 = vmul.f32 %v170, %v172
    %v174 = vmul.f32 %v171, %v172
    %v175 = vperm.slane %v119, 0
    %v176 = vadd.f32 %v173, %v175
    %v177 = vadd.f32 %v174, %v175
    %v178 = vcvt.s32.f32 %v42
    %v179 = vadd.f32 %v178, 0.5
    %v180 = vmul.f32 %v179, 0.125
    %v181 = vfloor.f32 %v180
    %vm182 = vcmp.eq.f32.partialorder %v52, %v181
    %vm183 = vcmp.eq.f32.partialorder %v53, %v181
    %v184 = vld [vmem:[%s1] sm:$0x1]
    %vm185 = vcmp.ne.s32.totalorder %v184, 0
    %v186 = vsel %vm185, 1, 0
    %v187 = vperm.slane %v186, 0
    %vm188 = vcmp.eq.s32.totalorder %v187, 1
    %vm189 = vmand %vm182, %vm188
    %vm190 = vmand %vm183, %vm188
    %v191 = vsel %vm189, 0.0, -10000.0
    %v192 = vsel %vm190, 0.0, -10000.0
    %v193 = vld [vmem:[%s3] sm:$0xff]
    %v194 = vld [vmem:[%s3 + $0x8] sm:$0xff]
    %v195 = vld [vmem:[%s3 + $0x10] sm:$0xff]
    %v196 = vld [vmem:[%s3 + $0x18] sm:$0xff]
    %v197 = vld [vmem:[%s3 + $0x20] sm:$0xff]
    %v198 = vld [vmem:[%s3 + $0x28] sm:$0xff]
    %v199 = vld [vmem:[%s3 + $0x30] sm:$0xff]
    %v200 = vld [vmem:[%s3 + $0x38] sm:$0xff]
    %v201 = vld [vmem:[%s5] sm:$0xff]
    %v202 = vperm.slane %v201, 0
    %v204 = vsel %vm120, %v176, 0
    %v207 = vsel %vm120, %v177, 0
    %209 = vmatpush.msra.mxu0 0.0
    %210 = vmatpush.msra.mxu0 0.0
    %211 = vmatpush.msra.mxu0 0.0
    %212 = vmatpush.msra.mxu0 0.0
    %213 = vmatpush.msra.mxu0 0.0
    %214 = vmatpush.msra.mxu0 0.0
    %215 = vmatpush.msra.mxu0 0.0
    %216 = vmatpush.msra.mxu0 0.0
    %217 = vmatpush.msra.mxu0 0.0
    %218 = vmatpush.msra.mxu0 0.0
    %219 = vmatpush.msra.mxu0 0.0
    %220 = vmatpush.msra.mxu0 0.0
    %221 = vmatpush.msra.mxu0 %v199
    %222 = vmatpush.msra.mxu0 %v197
    %223 = vmatpush.msra.mxu0 %v195
    %224 = vmatpush.msra.mxu0 %v193
    %225 = vmatmul.f32.gmra.mxu0 %v204
    %v226 = vpop.f32.mrf.mxu0
    %v227 = vadd.f32 %v202, %v226
    %228 = vmatmul.f32.gmra.mxu0 %v207
    %v229 = vpop.f32.mrf.mxu0
    %v230 = vadd.f32 %v202, %v229
    %231 = vdwg.mxu0
    %234 = vrot.lane.b32.xlu0 %v227, 96
    %v235 = vpop.permute.xlu0 %234
    %236 = vrot.lane.b32.xlu0 %v230, 96
    %v237 = vpop.permute.xlu0 %236
    %vm238 = vcmask 64512
    %v239 = vsel %vm238, %v227, 0
    %v241 = vsel %vm238, %v230, 0
    %v243 = vsel %vm238, %v235, 0
    %v245 = vsel %vm238, %v237, 0
    %247 = vmatpush.xpose.msra.mxu0 0.0
    %248 = vmatpush.xpose.msra.mxu0 0.0
    %249 = vmatpush.xpose.msra.mxu0 0.0
    %250 = vmatpush.xpose.msra.mxu0 0.0
    %251 = vmatpush.xpose.msra.mxu0 0.0
    %252 = vmatpush.xpose.msra.mxu0 0.0
    %253 = vmatpush.xpose.msra.mxu0 0.0
    %254 = vmatpush.xpose.msra.mxu0 0.0
    %255 = vmatpush.xpose.msra.mxu0 0.0
    %256 = vmatpush.xpose.msra.mxu0 0.0
    %257 = vmatpush.xpose.msra.mxu0 0.0
    %258 = vmatpush.xpose.msra.mxu0 0.0
    %259 = vmatpush.xpose.msra.mxu0 0.0
    %260 = vmatpush.xpose.msra.mxu0 0.0
    %261 = vmatpush.xpose.msra.mxu0 %v245
    %262 = vmatpush.xpose.msra.mxu0 %v243
    %263 = vmatmul.f32.gmra.mxu0 %v239
    %v264 = vpop.f32.mrf.mxu0
    %v265 = vadd.f32 %v191, %v264
    %266 = vmatmul.f32.gmra.mxu0 %v241
    %v267 = vpop.f32.mrf.mxu0
    %v268 = vadd.f32 %v192, %v267
    %269 = vdwg.mxu0
    %vm270 = vcmask 130048
    %v271 = vsel %vm270, %v265, -inf
    %272 = vmax.xlane.f32.xlu0 %v271
    %v273 = vpop.xlane.xlu0 %272
    %v274 = vsel %vm270, %v268, -inf
    %275 = vmax.xlane.f32.xlu0 %v274
    %v276 = vpop.xlane.xlu0 %275
    %v277 = vsub.f32 %v265, %v273
    %v278 = vsub.f32 %v268, %v276
    %v279 = vmul.f32 %v277, 1.442695
    %v280 = vpow.pop %v279
    %v281 = vmul.f32 %v278, 1.442695
    %v282 = vpow.pop %v281
    %v283 = vsel %vm270, %v280, 0.0
    %284 = vadd.xlane.f32.xlu0 %v283
    %v285 = vpop.xlane.xlu0 %284
    %v286 = vsel %vm270, %v282, 0.0
    %287 = vadd.xlane.f32.xlu0 %v286
    %v288 = vpop.xlane.xlu0 %287
    %v289 = vrcp.pop %v285
    %v290 = vrcp.pop %v288
    %v291 = vmul.f32 %v280, %v289
    %v292 = vmul.f32 %v282, %v290
    %293 = vrot.lane.b32.xlu0 %v227, 64
    %v294 = vpop.permute.xlu0 %293
    %295 = vrot.lane.b32.xlu0 %v230, 64
    %v296 = vpop.permute.xlu0 %295
    %v300 = vsel %vm270, %v291, 0
    %v303 = vsel %vm270, %v292, 0
    %305 = vmatpush.msra.mxu0 0.0
    %306 = vmatpush.msra.mxu0 0.0
    %307 = vmatpush.msra.mxu0 0.0
    %308 = vmatpush.msra.mxu0 0.0
    %309 = vmatpush.msra.mxu0 0.0
    %310 = vmatpush.msra.mxu0 0.0
    %311 = vmatpush.msra.mxu0 0.0
    %312 = vmatpush.msra.mxu0 0.0
    %313 = vmatpush.msra.mxu0 0.0
    %314 = vmatpush.msra.mxu0 0.0
    %315 = vmatpush.msra.mxu0 0.0
    %316 = vmatpush.msra.mxu0 0.0
    %317 = vmatpush.msra.mxu0 0.0
    %318 = vmatpush.msra.mxu0 0.0
    %319 = vmatpush.msra.mxu0 %v296
    %320 = vmatpush.msra.mxu0 %v294
    %321 = vmatmul.f32.gmra.mxu0 %v300
    %v322 = vpop.f32.mrf.mxu0
    %v323 = vadd.f32 0.0, %v322
    %324 = vmatmul.f32.gmra.mxu0 %v303
    %v325 = vpop.f32.mrf.mxu0
    %v326 = vadd.f32 0.0, %v325
    %327 = vdwg.mxu0
    %328 = vrot.lane.b32.xlu0 %v227, 120
    %v329 = vpop.permute.xlu0 %328
    %330 = vrot.lane.b32.xlu0 %v230, 120
    %v331 = vpop.permute.xlu0 %330
    %332 = vrot.lane.b32.xlu0 %v227, 88
    %v333 = vpop.permute.xlu0 %332
    %334 = vrot.lane.b32.xlu0 %v230, 88
    %v335 = vpop.permute.xlu0 %334
    %v336 = vsel %vm238, %v329, 0
    %v338 = vsel %vm238, %v331, 0
    %v340 = vsel %vm238, %v333, 0
    %v342 = vsel %vm238, %v335, 0
    %344 = vmatpush.xpose.msra.mxu0 0.0
    %345 = vmatpush.xpose.msra.mxu0 0.0
    %346 = vmatpush.xpose.msra.mxu0 0.0
    %347 = vmatpush.xpose.msra.mxu0 0.0
    %348 = vmatpush.xpose.msra.mxu0 0.0
    %349 = vmatpush.xpose.msra.mxu0 0.0
    %350 = vmatpush.xpose.msra.mxu0 0.0
    %351 = vmatpush.xpose.msra.mxu0 0.0
    %352 = vmatpush.xpose.msra.mxu0 0.0
    %353 = vmatpush.xpose.msra.mxu0 0.0
    %354 = vmatpush.xpose.msra.mxu0 0.0
    %355 = vmatpush.xpose.msra.mxu0 0.0
    %356 = vmatpush.xpose.msra.mxu0 0.0
    %357 = vmatpush.xpose.msra.mxu0 0.0
    %358 = vmatpush.xpose.msra.mxu0 %v342
    %359 = vmatpush.xpose.msra.mxu0 %v340
    %360 = vmatmul.f32.gmra.mxu0 %v336
    %v361 = vpop.f32.mrf.mxu0
    %v362 = vadd.f32 %v191, %v361
    %363 = vmatmul.f32.gmra.mxu0 %v338
    %v364 = vpop.f32.mrf.mxu0
    %v365 = vadd.f32 %v192, %v364
    %366 = vdwg.mxu0
    %v367 = vsel %vm270, %v362, -inf
    %368 = vmax.xlane.f32.xlu0 %v367
    %v369 = vpop.xlane.xlu0 %368
    %v370 = vsel %vm270, %v365, -inf
    %371 = vmax.xlane.f32.xlu0 %v370
    %v372 = vpop.xlane.xlu0 %371
    %v373 = vsub.f32 %v362, %v369
    %v374 = vsub.f32 %v365, %v372
    %v375 = vmul.f32 %v373, 1.442695
    %v376 = vpow.pop %v375
    %v377 = vmul.f32 %v374, 1.442695
    %v378 = vpow.pop %v377
    %v379 = vsel %vm270, %v376, 0.0
    %380 = vadd.xlane.f32.xlu0 %v379
    %v381 = vpop.xlane.xlu0 %380
    %v382 = vsel %vm270, %v378, 0.0
    %383 = vadd.xlane.f32.xlu0 %v382
    %v384 = vpop.xlane.xlu0 %383
    %v385 = vrcp.pop %v381
    %v386 = vrcp.pop %v384
    %v387 = vmul.f32 %v376, %v385
    %v388 = vmul.f32 %v378, %v386
    %389 = vrot.lane.b32.xlu0 %v227, 56
    %v390 = vpop.permute.xlu0 %389
    %391 = vrot.lane.b32.xlu0 %v230, 56
    %v392 = vpop.permute.xlu0 %391
    %v396 = vsel %vm270, %v387, 0
    %v399 = vsel %vm270, %v388, 0
    %401 = vmatpush.msra.mxu0 0.0
    %402 = vmatpush.msra.mxu0 0.0
    %403 = vmatpush.msra.mxu0 0.0
    %404 = vmatpush.msra.mxu0 0.0
    %405 = vmatpush.msra.mxu0 0.0
    %406 = vmatpush.msra.mxu0 0.0
    %407 = vmatpush.msra.mxu0 0.0
    %408 = vmatpush.msra.mxu0 0.0
    %409 = vmatpush.msra.mxu0 0.0
    %410 = vmatpush.msra.mxu0 0.0
    %411 = vmatpush.msra.mxu0 0.0
    %412 = vmatpush.msra.mxu0 0.0
    %413 = vmatpush.msra.mxu0 0.0
    %414 = vmatpush.msra.mxu0 0.0
    %415 = vmatpush.msra.mxu0 %v392
    %416 = vmatpush.msra.mxu0 %v390
    %417 = vmatmul.f32.gmra.mxu0 %v396
    %v418 = vpop.f32.mrf.mxu0
    %v419 = vadd.f32 0.0, %v418
    %420 = vmatmul.f32.gmra.mxu0 %v399
    %v421 = vpop.f32.mrf.mxu0
    %v422 = vadd.f32 0.0, %v421
    %423 = vdwg.mxu0
    %424 = vrot.lane.b32.xlu0 %v227, 112
    %v425 = vpop.permute.xlu0 %424
    %426 = vrot.lane.b32.xlu0 %v230, 112
    %v427 = vpop.permute.xlu0 %426
    %428 = vrot.lane.b32.xlu0 %v227, 80
    %v429 = vpop.permute.xlu0 %428
    %430 = vrot.lane.b32.xlu0 %v230, 80
    %v431 = vpop.permute.xlu0 %430
    %v432 = vsel %vm238, %v425, 0
    %v434 = vsel %vm238, %v427, 0
    %v436 = vsel %vm238, %v429, 0
    %v438 = vsel %vm238, %v431, 0
    %440 = vmatpush.xpose.msra.mxu0 0.0
    %441 = vmatpush.xpose.msra.mxu0 0.0
    %442 = vmatpush.xpose.msra.mxu0 0.0
    %443 = vmatpush.xpose.msra.mxu0 0.0
    %444 = vmatpush.xpose.msra.mxu0 0.0
    %445 = vmatpush.xpose.msra.mxu0 0.0
    %446 = vmatpush.xpose.msra.mxu0 0.0
    %447 = vmatpush.xpose.msra.mxu0 0.0
    %448 = vmatpush.xpose.msra.mxu0 0.0
    %449 = vmatpush.xpose.msra.mxu0 0.0
    %450 = vmatpush.xpose.msra.mxu0 0.0
    %451 = vmatpush.xpose.msra.mxu0 0.0
    %452 = vmatpush.xpose.msra.mxu0 0.0
    %453 = vmatpush.xpose.msra.mxu0 0.0
    %454 = vmatpush.xpose.msra.mxu0 %v438
    %455 = vmatpush.xpose.msra.mxu0 %v436
    %456 = vmatmul.f32.gmra.mxu0 %v432
    %v457 = vpop.f32.mrf.mxu0
    %v458 = vadd.f32 %v191, %v457
    %459 = vmatmul.f32.gmra.mxu0 %v434
    %v460 = vpop.f32.mrf.mxu0
    %v461 = vadd.f32 %v192, %v460
    %462 = vdwg.mxu0
    %v463 = vsel %vm270, %v458, -inf
    %464 = vmax.xlane.f32.xlu0 %v463
    %v465 = vpop.xlane.xlu0 %464
    %v466 = vsel %vm270, %v461, -inf
    %467 = vmax.xlane.f32.xlu0 %v466
    %v468 = vpop.xlane.xlu0 %467
    %v469 = vsub.f32 %v458, %v465
    %v470 = vsub.f32 %v461, %v468
    %v471 = vmul.f32 %v469, 1.442695
    %v472 = vpow.pop %v471
    %v473 = vmul.f32 %v470, 1.442695
    %v474 = vpow.pop %v473
    %v475 = vsel %vm270, %v472, 0.0
    %476 = vadd.xlane.f32.xlu0 %v475
    %v477 = vpop.xlane.xlu0 %476
    %v478 = vsel %vm270, %v474, 0.0
    %479 = vadd.xlane.f32.xlu0 %v478
    %v480 = vpop.xlane.xlu0 %479
    %v481 = vrcp.pop %v477
    %v482 = vrcp.pop %v480
    %v483 = vmul.f32 %v472, %v481
    %v484 = vmul.f32 %v474, %v482
    %485 = vrot.lane.b32.xlu0 %v227, 48
    %v486 = vpop.permute.xlu0 %485
    %487 = vrot.lane.b32.xlu0 %v230, 48
    %v488 = vpop.permute.xlu0 %487
    %v492 = vsel %vm270, %v483, 0
    %v495 = vsel %vm270, %v484, 0
    %497 = vmatpush.msra.mxu0 0.0
    %498 = vmatpush.msra.mxu0 0.0
    %499 = vmatpush.msra.mxu0 0.0
    %500 = vmatpush.msra.mxu0 0.0
    %501 = vmatpush.msra.mxu0 0.0
    %502 = vmatpush.msra.mxu0 0.0
    %503 = vmatpush.msra.mxu0 0.0
    %504 = vmatpush.msra.mxu0 0.0
    %505 = vmatpush.msra.mxu0 0.0
    %506 = vmatpush.msra.mxu0 0.0
    %507 = vmatpush.msra.mxu0 0.0
    %508 = vmatpush.msra.mxu0 0.0
    %509 = vmatpush.msra.mxu0 0.0
    %510 = vmatpush.msra.mxu0 0.0
    %511 = vmatpush.msra.mxu0 %v488
    %512 = vmatpush.msra.mxu0 %v486
    %513 = vmatmul.f32.gmra.mxu0 %v492
    %v514 = vpop.f32.mrf.mxu0
    %v515 = vadd.f32 0.0, %v514
    %516 = vmatmul.f32.gmra.mxu0 %v495
    %v517 = vpop.f32.mrf.mxu0
    %v518 = vadd.f32 0.0, %v517
    %519 = vdwg.mxu0
    %520 = vrot.lane.b32.xlu0 %v227, 104
    %v521 = vpop.permute.xlu0 %520
    %522 = vrot.lane.b32.xlu0 %v230, 104
    %v523 = vpop.permute.xlu0 %522
    %524 = vrot.lane.b32.xlu0 %v227, 72
    %v525 = vpop.permute.xlu0 %524
    %526 = vrot.lane.b32.xlu0 %v230, 72
    %v527 = vpop.permute.xlu0 %526
    %v528 = vsel %vm238, %v521, 0
    %v530 = vsel %vm238, %v523, 0
    %v532 = vsel %vm238, %v525, 0
    %v534 = vsel %vm238, %v527, 0
    %536 = vmatpush.xpose.msra.mxu0 0.0
    %537 = vmatpush.xpose.msra.mxu0 0.0
    %538 = vmatpush.xpose.msra.mxu0 0.0
    %539 = vmatpush.xpose.msra.mxu0 0.0
    %540 = vmatpush.xpose.msra.mxu0 0.0
    %541 = vmatpush.xpose.msra.mxu0 0.0
    %542 = vmatpush.xpose.msra.mxu0 0.0
    %543 = vmatpush.xpose.msra.mxu0 0.0
    %544 = vmatpush.xpose.msra.mxu0 0.0
    %545 = vmatpush.xpose.msra.mxu0 0.0
    %546 = vmatpush.xpose.msra.mxu0 0.0
    %547 = vmatpush.xpose.msra.mxu0 0.0
    %548 = vmatpush.xpose.msra.mxu0 0.0
    %549 = vmatpush.xpose.msra.mxu0 0.0
    %550 = vmatpush.xpose.msra.mxu0 %v534
    %551 = vmatpush.xpose.msra.mxu0 %v532
    %552 = vmatmul.f32.gmra.mxu0 %v528
    %v553 = vpop.f32.mrf.mxu0
    %v554 = vadd.f32 %v191, %v553
    %555 = vmatmul.f32.gmra.mxu0 %v530
    %v556 = vpop.f32.mrf.mxu0
    %v557 = vadd.f32 %v192, %v556
    %558 = vdwg.mxu0
    %v559 = vsel %vm270, %v554, -inf
    %560 = vmax.xlane.f32.xlu0 %v559
    %v561 = vpop.xlane.xlu0 %560
    %v562 = vsel %vm270, %v557, -inf
    %563 = vmax.xlane.f32.xlu0 %v562
    %v564 = vpop.xlane.xlu0 %563
    %v565 = vsub.f32 %v554, %v561
    %v566 = vsub.f32 %v557, %v564
    %v567 = vmul.f32 %v565, 1.442695
    %v568 = vpow.pop %v567
    %v569 = vmul.f32 %v566, 1.442695
    %v570 = vpow.pop %v569
    %v571 = vsel %vm270, %v568, 0.0
    %572 = vadd.xlane.f32.xlu0 %v571
    %v573 = vpop.xlane.xlu0 %572
    %v574 = vsel %vm270, %v570, 0.0
    %575 = vadd.xlane.f32.xlu0 %v574
    %v576 = vpop.xlane.xlu0 %575
    %v577 = vrcp.pop %v573
    %v578 = vrcp.pop %v576
    %v579 = vmul.f32 %v568, %v577
    %v580 = vmul.f32 %v570, %v578
    %581 = vrot.lane.b32.xlu0 %v227, 40
    %v582 = vpop.permute.xlu0 %581
    %583 = vrot.lane.b32.xlu0 %v230, 40
    %v584 = vpop.permute.xlu0 %583
    %v588 = vsel %vm270, %v579, 0
    %v591 = vsel %vm270, %v580, 0
    %593 = vmatpush.msra.mxu0 0.0
    %594 = vmatpush.msra.mxu0 0.0
    %595 = vmatpush.msra.mxu0 0.0
    %596 = vmatpush.msra.mxu0 0.0
    %597 = vmatpush.msra.mxu0 0.0
    %598 = vmatpush.msra.mxu0 0.0
    %599 = vmatpush.msra.mxu0 0.0
    %600 = vmatpush.msra.mxu0 0.0
    %601 = vmatpush.msra.mxu0 0.0
    %602 = vmatpush.msra.mxu0 0.0
    %603 = vmatpush.msra.mxu0 0.0
    %604 = vmatpush.msra.mxu0 0.0
    %605 = vmatpush.msra.mxu0 0.0
    %606 = vmatpush.msra.mxu0 0.0
    %607 = vmatpush.msra.mxu0 %v584
    %608 = vmatpush.msra.mxu0 %v582
    %609 = vmatmul.f32.gmra.mxu0 %v588
    %v610 = vpop.f32.mrf.mxu0
    %v611 = vadd.f32 0.0, %v610
    %612 = vmatmul.f32.gmra.mxu0 %v591
    %v613 = vpop.f32.mrf.mxu0
    %v614 = vadd.f32 0.0, %v613
    %615 = vdwg.mxu0
    %618 = vrot.lane.b32.xlu0 %v419, 8
    %v619 = vpop.permute.xlu0 %618
    %620 = vrot.lane.b32.xlu0 %v422, 8
    %v621 = vpop.permute.xlu0 %620
    %626 = vrot.lane.b32.xlu0 %v515, 16
    %v627 = vpop.permute.xlu0 %626
    %628 = vrot.lane.b32.xlu0 %v518, 16
    %v629 = vpop.permute.xlu0 %628
    %634 = vrot.lane.b32.xlu0 %v611, 24
    %v635 = vpop.permute.xlu0 %634
    %636 = vrot.lane.b32.xlu0 %v614, 24
    %v637 = vpop.permute.xlu0 %636
    %v640 = vsel %vm238, %v323, %v619
    %v641 = vsel %vm238, %v326, %v621
    %v642 = vsel %vm270, %v640, %v627
    %v643 = vsel %vm270, %v641, %v629
    %vm644 = vcmask 195584
    %v645 = vsel %vm644, %v642, %v635
    %v646 = vsel %vm644, %v643, %v637
    %v647 = vperm.slane %v201, 1
    %652 = vrot.lane.b32.xlu0 %v193, 32
    %v653 = vpop.permute.xlu0 %652
    %654 = vrot.lane.b32.xlu0 %v195, 32
    %v655 = vpop.permute.xlu0 %654
    %656 = vrot.lane.b32.xlu0 %v197, 32
    %v657 = vpop.permute.xlu0 %656
    %658 = vrot.lane.b32.xlu0 %v199, 32
    %v659 = vpop.permute.xlu0 %658
    %v665 = vsel %vm120, %v645, 0
    %v668 = vsel %vm120, %v646, 0
    %670 = vmatpush.msra.mxu0 0.0
    %671 = vmatpush.msra.mxu0 0.0
    %672 = vmatpush.msra.mxu0 0.0
    %673 = vmatpush.msra.mxu0 0.0
    %674 = vmatpush.msra.mxu0 0.0
    %675 = vmatpush.msra.mxu0 0.0
    %676 = vmatpush.msra.mxu0 0.0
    %677 = vmatpush.msra.mxu0 0.0
    %678 = vmatpush.msra.mxu0 0.0
    %679 = vmatpush.msra.mxu0 0.0
    %680 = vmatpush.msra.mxu0 0.0
    %681 = vmatpush.msra.mxu0 0.0
    %682 = vmatpush.msra.mxu0 %v659
    %683 = vmatpush.msra.mxu0 %v657
    %684 = vmatpush.msra.mxu0 %v655
    %685 = vmatpush.msra.mxu0 %v653
    %686 = vmatmul.f32.gmra.mxu0 %v665
    %v687 = vpop.f32.mrf.mxu0
    %v688 = vadd.f32 %v647, %v687
    %689 = vmatmul.f32.gmra.mxu0 %v668
    %v690 = vpop.f32.mrf.mxu0
    %v691 = vadd.f32 %v647, %v690
    %692 = vdwg.mxu0
    %v693 = vadd.f32 %v176, %v688
    %v694 = vadd.f32 %v177, %v691
    %v695 = vsel %vm120, %v693, 0.0
    %696 = vadd.xlane.f32.xlu0 %v695
    %v697 = vpop.xlane.xlu0 %696
    %v698 = vsel %vm120, %v694, 0.0
    %699 = vadd.xlane.f32.xlu0 %v698
    %v700 = vpop.xlane.xlu0 %699
    %v701 = vmul.f32 %v697, %v133
    %v702 = vmul.f32 %v700, %v133
    %v703 = vsub.f32 %v693, %v701
    %v704 = vsub.f32 %v694, %v702
    %v705 = vmul.f32 %v703, %v703
    %v706 = vmul.f32 %v704, %v704
    %v707 = vsel %vm120, %v705, 0.0
    %708 = vadd.xlane.f32.xlu0 %v707
    %v709 = vpop.xlane.xlu0 %708
    %v710 = vsel %vm120, %v706, 0.0
    %711 = vadd.xlane.f32.xlu0 %v710
    %v712 = vpop.xlane.xlu0 %711
    %v713 = vmul.f32 %v709, %v133
    %v714 = vmul.f32 %v712, %v133
    %v715 = vadd.f32 %v713, 1e-12
    %v716 = vadd.f32 %v714, 1e-12
    %v717 = vrsqrt.pop %v715
    %v718 = vmul.f32 %v717, %v715
    %v719 = vmul.f32 %v718, %v717
    %v720 = vmul.f32 0.5, %v719
    %v721 = vsub.f32 1.5, %v720
    %v722 = vmul.f32 %v717, %v721
    %vm723 = vweird.f32 %v715
    %vm724 = vweird.f32 %v717
    %vm725 = vmor %vm723, %vm724
    %v726 = vsel %vm725, %v717, %v722
    %v727 = vrsqrt.pop %v716
    %v728 = vmul.f32 %v727, %v716
    %v729 = vmul.f32 %v728, %v727
    %v730 = vmul.f32 0.5, %v729
    %v731 = vsub.f32 1.5, %v730
    %v732 = vmul.f32 %v727, %v731
    %vm733 = vweird.f32 %v716
    %vm734 = vweird.f32 %v727
    %vm735 = vmor %vm733, %vm734
    %v736 = vsel %vm735, %v727, %v732
    %v737 = vmul.f32 %v703, %v726
    %v738 = vmul.f32 %v704, %v736
    %v739 = vperm.slane %v201, 2
    %v740 = vmul.f32 %v737, %v739
    %v741 = vmul.f32 %v738, %v739
    %v742 = vperm.slane %v201, 3
    %v743 = vadd.f32 %v740, %v742
    %v744 = vadd.f32 %v741, %v742
    %v745 = vperm.slane %v201, 4
    %v747 = vsel %vm120, %v743, 0
    %v750 = vsel %vm120, %v744, 0
    %752 = vmatpush.msra.mxu0 0.0
    %753 = vmatpush.msra.mxu0 0.0
    %754 = vmatpush.msra.mxu0 0.0
    %755 = vmatpush.msra.mxu0 0.0
    %756 = vmatpush.msra.mxu0 0.0
    %757 = vmatpush.msra.mxu0 0.0
    %758 = vmatpush.msra.mxu0 0.0
    %759 = vmatpush.msra.mxu0 0.0
    %760 = vmatpush.msra.mxu0 0.0
    %761 = vmatpush.msra.mxu0 0.0
    %762 = vmatpush.msra.mxu0 0.0
    %763 = vmatpush.msra.mxu0 0.0
    %764 = vmatpush.msra.mxu0 %v200
    %765 = vmatpush.msra.mxu0 %v198
    %766 = vmatpush.msra.mxu0 %v196
    %767 = vmatpush.msra.mxu0 %v194
    %768 = vmatmul.f32.gmra.mxu0 %v747
    %v769 = vpop.f32.mrf.mxu0
    %v770 = vadd.f32 %v745, %v769
    %771 = vmatmul.f32.gmra.mxu0 %v750
    %v772 = vpop.f32.mrf.mxu0
    %v773 = vadd.f32 %v745, %v772
    %774 = vdwg.mxu0
    %v775 = vmul.f32 %v770, 0.5
    %v776 = vmul.f32 %v773, 0.5
    %v777 = vmul.f32 %v770, 0.044715
    %v778 = vmul.f32 %v773, 0.044715
    %v779 = vmul.f32 %v777, %v770
    %v780 = vmul.f32 %v778, %v773
    %v781 = vmul.f32 %v779, %v770
    %v782 = vmul.f32 %v780, %v773
    %v783 = vadd.f32 %v770, %v781
    %v784 = vadd.f32 %v773, %v782
    %v785 = vmul.f32 %v783, 0.7978846
    %v786 = vmul.f32 %v784, 0.7978846
    %v787 = vtanh.pop %v785
    %v788 = vtanh.pop %v786
    %v789 = vadd.f32 %v787, 1.0
    %v790 = vadd.f32 %v788, 1.0
    %v791 = vmul.f32 %v775, %v789
    %v792 = vmul.f32 %v776, %v790
    %v793 = vld [vmem:[%s4] sm:$0xff]
    %v794 = vld [vmem:[%s4 + $0x8] sm:$0xff]
    %v795 = vld [vmem:[%s4 + $0x10] sm:$0xff]
    %v796 = vld [vmem:[%s4 + $0x18] sm:$0xff]
    %v797 = vld [vmem:[%s4 + $0x20] sm:$0xff]
    %v798 = vld [vmem:[%s4 + $0x28] sm:$0xff]
    %v799 = vld [vmem:[%s4 + $0x30] sm:$0xff]
    %v800 = vld [vmem:[%s4 + $0x38] sm:$0xff]
    %v801 = vperm.slane %v201, 5
    %vm802 = vcmask 523264
    %v804 = vsel %vm802, %v791, 0
    %v807 = vsel %vm802, %v792, 0
    %809 = vmatpush.msra.mxu0 0.0
    %810 = vmatpush.msra.mxu0 0.0
    %811 = vmatpush.msra.mxu0 0.0
    %812 = vmatpush.msra.mxu0 0.0
    %813 = vmatpush.msra.mxu0 0.0
    %814 = vmatpush.msra.mxu0 0.0
    %815 = vmatpush.msra.mxu0 0.0
    %816 = vmatpush.msra.mxu0 0.0
    %817 = vmatpush.msra.mxu0 %v800
    %818 = vmatpush.msra.mxu0 %v799
    %819 = vmatpush.msra.mxu0 %v798
    %820 = vmatpush.msra.mxu0 %v797
    %821 = vmatpush.msra.mxu0 %v796
    %822 = vmatpush.msra.mxu0 %v795
    %823 = vmatpush.msra.mxu0 %v794
    %824 = vmatpush.msra.mxu0 %v793
    %825 = vmatmul.f32.gmra.mxu0 %v804
    %v826 = vpop.f32.mrf.mxu0
    %v827 = vadd.f32 %v801, %v826
    %828 = vmatmul.f32.gmra.mxu0 %v807
    %v829 = vpop.f32.mrf.mxu0
    %v830 = vadd.f32 %v801, %v829
    %831 = vdwg.mxu0
    %v832 = vadd.f32 %v743, %v827
    %v833 = vadd.f32 %v744, %v830
    %v834 = vsel %vm120, %v832, 0.0
    %835 = vadd.xlane.f32.xlu0 %v834
    %v836 = vpop.xlane.xlu0 %835
    %v837 = vsel %vm120, %v833, 0.0
    %838 = vadd.xlane.f32.xlu0 %v837
    %v839 = vpop.xlane.xlu0 %838
    %v840 = vmul.f32 %v836, %v133
    %v841 = vmul.f32 %v839, %v133
    %v842 = vsub.f32 %v832, %v840
    %v843 = vsub.f32 %v833, %v841
    %v844 = vmul.f32 %v842, %v842
    %v845 = vmul.f32 %v843, %v843
    %v846 = vsel %vm120, %v844, 0.0
    %847 = vadd.xlane.f32.xlu0 %v846
    %v848 = vpop.xlane.xlu0 %847
    %v849 = vsel %vm120, %v845, 0.0
    %850 = vadd.xlane.f32.xlu0 %v849
    %v851 = vpop.xlane.xlu0 %850
    %v852 = vmul.f32 %v848, %v133
    %v853 = vmul.f32 %v851, %v133
    %v854 = vadd.f32 %v852, 1e-12
    %v855 = vadd.f32 %v853, 1e-12
    %v856 = vrsqrt.pop %v854
    %v857 = vmul.f32 %v856, %v854
    %v858 = vmul.f32 %v857, %v856
    %v859 = vmul.f32 0.5, %v858
    %v860 = vsub.f32 1.5, %v859
    %v861 = vmul.f32 %v856, %v860
    %vm862 = vweird.f32 %v854
    %vm863 = vweird.f32 %v856
    %vm864 = vmor %vm862, %vm863
    %v865 = vsel %vm864, %v856, %v861
    %v866 = vrsqrt.pop %v855
    %v867 = vmul.f32 %v866, %v855
    %v868 = vmul.f32 %v867, %v866
    %v869 = vmul.f32 0.5, %v868
    %v870 = vsub.f32 1.5, %v869
    %v871 = vmul.f32 %v866, %v870
    %vm872 = vweird.f32 %v855
    %vm873 = vweird.f32 %v866
    %vm874 = vmor %vm872, %vm873
    %v875 = vsel %vm874, %v866, %v871
    %v876 = vmul.f32 %v842, %v865
    %v877 = vmul.f32 %v843, %v875
    %v878 = vperm.slane %v201, 6
    %v879 = vmul.f32 %v876, %v878
    %v880 = vmul.f32 %v877, %v878
    %v881 = vperm.slane %v201, 7
    %v882 = vadd.f32 %v879, %v881
    %v883 = vadd.f32 %v880, %v881
    %s884 = scalar_lea.vmem %s3, 64
    %v885 = vld [vmem:[%s884] sm:$0xff]
    %v886 = vld [vmem:[%s884 + $0x8] sm:$0xff]
    %v887 = vld [vmem:[%s884 + $0x10] sm:$0xff]
    %v888 = vld [vmem:[%s884 + $0x18] sm:$0xff]
    %v889 = vld [vmem:[%s884 + $0x20] sm:$0xff]
    %v890 = vld [vmem:[%s884 + $0x28] sm:$0xff]
    %v891 = vld [vmem:[%s884 + $0x30] sm:$0xff]
    %v892 = vld [vmem:[%s884 + $0x38] sm:$0xff]
    %s893 = scalar_lea.vmem %s5, 8
    %v894 = vld [vmem:[%s893] sm:$0xff]
    %v895 = vperm.slane %v894, 0
    %v897 = vsel %vm120, %v882, 0
    %v900 = vsel %vm120, %v883, 0
    %902 = vmatpush.msra.mxu0 0.0
    %903 = vmatpush.msra.mxu0 0.0
    %904 = vmatpush.msra.mxu0 0.0
    %905 = vmatpush.msra.mxu0 0.0
    %906 = vmatpush.msra.mxu0 0.0
    %907 = vmatpush.msra.mxu0 0.0
    %908 = vmatpush.msra.mxu0 0.0
    %909 = vmatpush.msra.mxu0 0.0
    %910 = vmatpush.msra.mxu0 0.0
    %911 = vmatpush.msra.mxu0 0.0
    %912 = vmatpush.msra.mxu0 0.0
    %913 = vmatpush.msra.mxu0 0.0
    %914 = vmatpush.msra.mxu0 %v891
    %915 = vmatpush.msra.mxu0 %v889
    %916 = vmatpush.msra.mxu0 %v887
    %917 = vmatpush.msra.mxu0 %v885
    %918 = vmatmul.f32.gmra.mxu0 %v897
    %v919 = vpop.f32.mrf.mxu0
    %v920 = vadd.f32 %v895, %v919
    %921 = vmatmul.f32.gmra.mxu0 %v900
    %v922 = vpop.f32.mrf.mxu0
    %v923 = vadd.f32 %v895, %v922
    %924 = vdwg.mxu0
    %927 = vrot.lane.b32.xlu0 %v920, 96
    %v928 = vpop.permute.xlu0 %927
    %929 = vrot.lane.b32.xlu0 %v923, 96
    %v930 = vpop.permute.xlu0 %929
    %v931 = vsel %vm238, %v920, 0
    %v933 = vsel %vm238, %v923, 0
    %v935 = vsel %vm238, %v928, 0
    %v937 = vsel %vm238, %v930, 0
    %939 = vmatpush.xpose.msra.mxu0 0.0
    %940 = vmatpush.xpose.msra.mxu0 0.0
    %941 = vmatpush.xpose.msra.mxu0 0.0
    %942 = vmatpush.xpose.msra.mxu0 0.0
    %943 = vmatpush.xpose.msra.mxu0 0.0
    %944 = vmatpush.xpose.msra.mxu0 0.0
    %945 = vmatpush.xpose.msra.mxu0 0.0
    %946 = vmatpush.xpose.msra.mxu0 0.0
    %947 = vmatpush.xpose.msra.mxu0 0.0
    %948 = vmatpush.xpose.msra.mxu0 0.0
    %949 = vmatpush.xpose.msra.mxu0 0.0
    %950 = vmatpush.xpose.msra.mxu0 0.0
    %951 = vmatpush.xpose.msra.mxu0 0.0
    %952 = vmatpush.xpose.msra.mxu0 0.0
    %953 = vmatpush.xpose.msra.mxu0 %v937
    %954 = vmatpush.xpose.msra.mxu0 %v935
    %955 = vmatmul.f32.gmra.mxu0 %v931
    %v956 = vpop.f32.mrf.mxu0
    %v957 = vadd.f32 %v191, %v956
    %958 = vmatmul.f32.gmra.mxu0 %v933
    %v959 = vpop.f32.mrf.mxu0
    %v960 = vadd.f32 %v192, %v959
    %961 = vdwg.mxu0
    %v962 = vsel %vm270, %v957, -inf
    %963 = vmax.xlane.f32.xlu0 %v962
    %v964 = vpop.xlane.xlu0 %963
    %v965 = vsel %vm270, %v960, -inf
    %966 = vmax.xlane.f32.xlu0 %v965
    %v967 = vpop.xlane.xlu0 %966
    %v968 = vsub.f32 %v957, %v964
    %v969 = vsub.f32 %v960, %v967
    %v970 = vmul.f32 %v968, 1.442695
    %v971 = vpow.pop %v970
    %v972 = vmul.f32 %v969, 1.442695
    %v973 = vpow.pop %v972
    %v974 = vsel %vm270, %v971, 0.0
    %975 = vadd.xlane.f32.xlu0 %v974
    %v976 = vpop.xlane.xlu0 %975
    %v977 = vsel %vm270, %v973, 0.0
    %978 = vadd.xlane.f32.xlu0 %v977
    %v979 = vpop.xlane.xlu0 %978
    %v980 = vrcp.pop %v976
    %v981 = vrcp.pop %v979
    %v982 = vmul.f32 %v971, %v980
    %v983 = vmul.f32 %v973, %v981
    %984 = vrot.lane.b32.xlu0 %v920, 64
    %v985 = vpop.permute.xlu0 %984
    %986 = vrot.lane.b32.xlu0 %v923, 64
    %v987 = vpop.permute.xlu0 %986
    %v991 = vsel %vm270, %v982, 0
    %v994 = vsel %vm270, %v983, 0
    %996 = vmatpush.msra.mxu0 0.0
    %997 = vmatpush.msra.mxu0 0.0
    %998 = vmatpush.msra.mxu0 0.0
    %999 = vmatpush.msra.mxu0 0.0
    %1000 = vmatpush.msra.mxu0 0.0
    %1001 = vmatpush.msra.mxu0 0.0
    %1002 = vmatpush.msra.mxu0 0.0
    %1003 = vmatpush.msra.mxu0 0.0
    %1004 = vmatpush.msra.mxu0 0.0
    %1005 = vmatpush.msra.mxu0 0.0
    %1006 = vmatpush.msra.mxu0 0.0
    %1007 = vmatpush.msra.mxu0 0.0
    %1008 = vmatpush.msra.mxu0 0.0
    %1009 = vmatpush.msra.mxu0 0.0
    %1010 = vmatpush.msra.mxu0 %v987
    %1011 = vmatpush.msra.mxu0 %v985
    %1012 = vmatmul.f32.gmra.mxu0 %v991
    %v1013 = vpop.f32.mrf.mxu0
    %v1014 = vadd.f32 0.0, %v1013
    %1015 = vmatmul.f32.gmra.mxu0 %v994
    %v1016 = vpop.f32.mrf.mxu0
    %v1017 = vadd.f32 0.0, %v1016
    %1018 = vdwg.mxu0
    %1019 = vrot.lane.b32.xlu0 %v920, 120
    %v1020 = vpop.permute.xlu0 %1019
    %1021 = vrot.lane.b32.xlu0 %v923, 120
    %v1022 = vpop.permute.xlu0 %1021
    %1023 = vrot.lane.b32.xlu0 %v920, 88
    %v1024 = vpop.permute.xlu0 %1023
    %1025 = vrot.lane.b32.xlu0 %v923, 88
    %v1026 = vpop.permute.xlu0 %1025
    %v1027 = vsel %vm238, %v1020, 0
    %v1029 = vsel %vm238, %v1022, 0
    %v1031 = vsel %vm238, %v1024, 0
    %v1033 = vsel %vm238, %v1026, 0
    %1035 = vmatpush.xpose.msra.mxu0 0.0
    %1036 = vmatpush.xpose.msra.mxu0 0.0
    %1037 = vmatpush.xpose.msra.mxu0 0.0
    %1038 = vmatpush.xpose.msra.mxu0 0.0
    %1039 = vmatpush.xpose.msra.mxu0 0.0
    %1040 = vmatpush.xpose.msra.mxu0 0.0
    %1041 = vmatpush.xpose.msra.mxu0 0.0
    %1042 = vmatpush.xpose.msra.mxu0 0.0
    %1043 = vmatpush.xpose.msra.mxu0 0.0
    %1044 = vmatpush.xpose.msra.mxu0 0.0
    %1045 = vmatpush.xpose.msra.mxu0 0.0
    %1046 = vmatpush.xpose.msra.mxu0 0.0
    %1047 = vmatpush.xpose.msra.mxu0 0.0
    %1048 = vmatpush.xpose.msra.mxu0 0.0
    %1049 = vmatpush.xpose.msra.mxu0 %v1033
    %1050 = vmatpush.xpose.msra.mxu0 %v1031
    %1051 = vmatmul.f32.gmra.mxu0 %v1027
    %v1052 = vpop.f32.mrf.mxu0
    %v1053 = vadd.f32 %v191, %v1052
    %1054 = vmatmul.f32.gmra.mxu0 %v1029
    %v1055 = vpop.f32.mrf.mxu0
    %v1056 = vadd.f32 %v192, %v1055
    %1057 = vdwg.mxu0
    %v1058 = vsel %vm270, %v1053, -inf
    %1059 = vmax.xlane.f32.xlu0 %v1058
    %v1060 = vpop.xlane.xlu0 %1059
    %v1061 = vsel %vm270, %v1056, -inf
    %1062 = vmax.xlane.f32.xlu0 %v1061
    %v1063 = vpop.xlane.xlu0 %1062
    %v1064 = vsub.f32 %v1053, %v1060
    %v1065 = vsub.f32 %v1056, %v1063
    %v1066 = vmul.f32 %v1064, 1.442695
    %v1067 = vpow.pop %v1066
    %v1068 = vmul.f32 %v1065, 1.442695
    %v1069 = vpow.pop %v1068
    %v1070 = vsel %vm270, %v1067, 0.0
    %1071 = vadd.xlane.f32.xlu0 %v1070
    %v1072 = vpop.xlane.xlu0 %1071
    %v1073 = vsel %vm270, %v1069, 0.0
    %1074 = vadd.xlane.f32.xlu0 %v1073
    %v1075 = vpop.xlane.xlu0 %1074
    %v1076 = vrcp.pop %v1072
    %v1077 = vrcp.pop %v1075
    %v1078 = vmul.f32 %v1067, %v1076
    %v1079 = vmul.f32 %v1069, %v1077
    %1080 = vrot.lane.b32.xlu0 %v920, 56
    %v1081 = vpop.permute.xlu0 %1080
    %1082 = vrot.lane.b32.xlu0 %v923, 56
    %v1083 = vpop.permute.xlu0 %1082
    %v1087 = vsel %vm270, %v1078, 0
    %v1090 = vsel %vm270, %v1079, 0
    %1092 = vmatpush.msra.mxu0 0.0
    %1093 = vmatpush.msra.mxu0 0.0
    %1094 = vmatpush.msra.mxu0 0.0
    %1095 = vmatpush.msra.mxu0 0.0
    %1096 = vmatpush.msra.mxu0 0.0
    %1097 = vmatpush.msra.mxu0 0.0
    %1098 = vmatpush.msra.mxu0 0.0
    %1099 = vmatpush.msra.mxu0 0.0
    %1100 = vmatpush.msra.mxu0 0.0
    %1101 = vmatpush.msra.mxu0 0.0
    %1102 = vmatpush.msra.mxu0 0.0
    %1103 = vmatpush.msra.mxu0 0.0
    %1104 = vmatpush.msra.mxu0 0.0
    %1105 = vmatpush.msra.mxu0 0.0
    %1106 = vmatpush.msra.mxu0 %v1083
    %1107 = vmatpush.msra.mxu0 %v1081
    %1108 = vmatmul.f32.gmra.mxu0 %v1087
    %v1109 = vpop.f32.mrf.mxu0
    %v1110 = vadd.f32 0.0, %v1109
    %1111 = vmatmul.f32.gmra.mxu0 %v1090
    %v1112 = vpop.f32.mrf.mxu0
    %v1113 = vadd.f32 0.0, %v1112
    %1114 = vdwg.mxu0
    %1115 = vrot.lane.b32.xlu0 %v920, 112
    %v1116 = vpop.permute.xlu0 %1115
    %1117 = vrot.lane.b32.xlu0 %v923, 112
    %v1118 = vpop.permute.xlu0 %1117
    %1119 = vrot.lane.b32.xlu0 %v920, 80
    %v1120 = vpop.permute.xlu0 %1119
    %1121 = vrot.lane.b32.xlu0 %v923, 80
    %v1122 = vpop.permute.xlu0 %1121
    %v1123 = vsel %vm238, %v1116, 0
    %v1125 = vsel %vm238, %v1118, 0
    %v1127 = vsel %vm238, %v1120, 0
    %v1129 = vsel %vm238, %v1122, 0
    %1131 = vmatpush.xpose.msra.mxu0 0.0
    %1132 = vmatpush.xpose.msra.mxu0 0.0
    %1133 = vmatpush.xpose.msra.mxu0 0.0
    %1134 = vmatpush.xpose.msra.mxu0 0.0
    %1135 = vmatpush.xpose.msra.mxu0 0.0
    %1136 = vmatpush.xpose.msra.mxu0 0.0
    %1137 = vmatpush.xpose.msra.mxu0 0.0
    %1138 = vmatpush.xpose.msra.mxu0 0.0
    %1139 = vmatpush.xpose.msra.mxu0 0.0
    %1140 = vmatpush.xpose.msra.mxu0 0.0
    %1141 = vmatpush.xpose.msra.mxu0 0.0
    %1142 = vmatpush.xpose.msra.mxu0 0.0
    %1143 = vmatpush.xpose.msra.mxu0 0.0
    %1144 = vmatpush.xpose.msra.mxu0 0.0
    %1145 = vmatpush.xpose.msra.mxu0 %v1129
    %1146 = vmatpush.xpose.msra.mxu0 %v1127
    %1147 = vmatmul.f32.gmra.mxu0 %v1123
    %v1148 = vpop.f32.mrf.mxu0
    %v1149 = vadd.f32 %v191, %v1148
    %1150 = vmatmul.f32.gmra.mxu0 %v1125
    %v1151 = vpop.f32.mrf.mxu0
    %v1152 = vadd.f32 %v192, %v1151
    %1153 = vdwg.mxu0
    %v1154 = vsel %vm270, %v1149, -inf
    %1155 = vmax.xlane.f32.xlu0 %v1154
    %v1156 = vpop.xlane.xlu0 %1155
    %v1157 = vsel %vm270, %v1152, -inf
    %1158 = vmax.xlane.f32.xlu0 %v1157
    %v1159 = vpop.xlane.xlu0 %1158
    %v1160 = vsub.f32 %v1149, %v1156
    %v1161 = vsub.f32 %v1152, %v1159
    %v1162 = vmul.f32 %v1160, 1.442695
    %v1163 = vpow.pop %v1162
    %v1164 = vmul.f32 %v1161, 1.442695
    %v1165 = vpow.pop %v1164
    %v1166 = vsel %vm270, %v1163, 0.0
    %1167 = vadd.xlane.f32.xlu0 %v1166
    %v1168 = vpop.xlane.xlu0 %1167
    %v1169 = vsel %vm270, %v1165, 0.0
    %1170 = vadd.xlane.f32.xlu0 %v1169
    %v1171 = vpop.xlane.xlu0 %1170
    %v1172 = vrcp.pop %v1168
    %v1173 = vrcp.pop %v1171
    %v1174 = vmul.f32 %v1163, %v1172
    %v1175 = vmul.f32 %v1165, %v1173
    %1176 = vrot.lane.b32.xlu0 %v920, 48
    %v1177 = vpop.permute.xlu0 %1176
    %1178 = vrot.lane.b32.xlu0 %v923, 48
    %v1179 = vpop.permute.xlu0 %1178
    %v1183 = vsel %vm270, %v1174, 0
    %v1186 = vsel %vm270, %v1175, 0
    %1188 = vmatpush.msra.mxu0 0.0
    %1189 = vmatpush.msra.mxu0 0.0
    %1190 = vmatpush.msra.mxu0 0.0
    %1191 = vmatpush.msra.mxu0 0.0
    %1192 = vmatpush.msra.mxu0 0.0
    %1193 = vmatpush.msra.mxu0 0.0
    %1194 = vmatpush.msra.mxu0 0.0
    %1195 = vmatpush.msra.mxu0 0.0
    %1196 = vmatpush.msra.mxu0 0.0
    %1197 = vmatpush.msra.mxu0 0.0
    %1198 = vmatpush.msra.mxu0 0.0
    %1199 = vmatpush.msra.mxu0 0.0
    %1200 = vmatpush.msra.mxu0 0.0
    %1201 = vmatpush.msra.mxu0 0.0
    %1202 = vmatpush.msra.mxu0 %v1179
    %1203 = vmatpush.msra.mxu0 %v1177
    %1204 = vmatmul.f32.gmra.mxu0 %v1183
    %v1205 = vpop.f32.mrf.mxu0
    %v1206 = vadd.f32 0.0, %v1205
    %1207 = vmatmul.f32.gmra.mxu0 %v1186
    %v1208 = vpop.f32.mrf.mxu0
    %v1209 = vadd.f32 0.0, %v1208
    %1210 = vdwg.mxu0
    %1211 = vrot.lane.b32.xlu0 %v920, 104
    %v1212 = vpop.permute.xlu0 %1211
    %1213 = vrot.lane.b32.xlu0 %v923, 104
    %v1214 = vpop.permute.xlu0 %1213
    %1215 = vrot.lane.b32.xlu0 %v920, 72
    %v1216 = vpop.permute.xlu0 %1215
    %1217 = vrot.lane.b32.xlu0 %v923, 72
    %v1218 = vpop.permute.xlu0 %1217
    %v1219 = vsel %vm238, %v1212, 0
    %v1221 = vsel %vm238, %v1214, 0
    %v1223 = vsel %vm238, %v1216, 0
    %v1225 = vsel %vm238, %v1218, 0
    %1227 = vmatpush.xpose.msra.mxu0 0.0
    %1228 = vmatpush.xpose.msra.mxu0 0.0
    %1229 = vmatpush.xpose.msra.mxu0 0.0
    %1230 = vmatpush.xpose.msra.mxu0 0.0
    %1231 = vmatpush.xpose.msra.mxu0 0.0
    %1232 = vmatpush.xpose.msra.mxu0 0.0
    %1233 = vmatpush.xpose.msra.mxu0 0.0
    %1234 = vmatpush.xpose.msra.mxu0 0.0
    %1235 = vmatpush.xpose.msra.mxu0 0.0
    %1236 = vmatpush.xpose.msra.mxu0 0.0
    %1237 = vmatpush.xpose.msra.mxu0 0.0
    %1238 = vmatpush.xpose.msra.mxu0 0.0
    %1239 = vmatpush.xpose.msra.mxu0 0.0
    %1240 = vmatpush.xpose.msra.mxu0 0.0
    %1241 = vmatpush.xpose.msra.mxu0 %v1225
    %1242 = vmatpush.xpose.msra.mxu0 %v1223
    %1243 = vmatmul.f32.gmra.mxu0 %v1219
    %v1244 = vpop.f32.mrf.mxu0
    %v1245 = vadd.f32 %v191, %v1244
    %1246 = vmatmul.f32.gmra.mxu0 %v1221
    %v1247 = vpop.f32.mrf.mxu0
    %v1248 = vadd.f32 %v192, %v1247
    %1249 = vdwg.mxu0
    %v1250 = vsel %vm270, %v1245, -inf
    %1251 = vmax.xlane.f32.xlu0 %v1250
    %v1252 = vpop.xlane.xlu0 %1251
    %v1253 = vsel %vm270, %v1248, -inf
    %1254 = vmax.xlane.f32.xlu0 %v1253
    %v1255 = vpop.xlane.xlu0 %1254
    %v1256 = vsub.f32 %v1245, %v1252
    %v1257 = vsub.f32 %v1248, %v1255
    %v1258 = vmul.f32 %v1256, 1.442695
    %v1259 = vpow.pop %v1258
    %v1260 = vmul.f32 %v1257, 1.442695
    %v1261 = vpow.pop %v1260
    %v1262 = vsel %vm270, %v1259, 0.0
    %1263 = vadd.xlane.f32.xlu0 %v1262
    %v1264 = vpop.xlane.xlu0 %1263
    %v1265 = vsel %vm270, %v1261, 0.0
    %1266 = vadd.xlane.f32.xlu0 %v1265
    %v1267 = vpop.xlane.xlu0 %1266
    %v1268 = vrcp.pop %v1264
    %v1269 = vrcp.pop %v1267
    %v1270 = vmul.f32 %v1259, %v1268
    %v1271 = vmul.f32 %v1261, %v1269
    %1272 = vrot.lane.b32.xlu0 %v920, 40
    %v1273 = vpop.permute.xlu0 %1272
    %1274 = vrot.lane.b32.xlu0 %v923, 40
    %v1275 = vpop.permute.xlu0 %1274
    %v1279 = vsel %vm270, %v1270, 0
    %v1282 = vsel %vm270, %v1271, 0
    %1284 = vmatpush.msra.mxu0 0.0
    %1285 = vmatpush.msra.mxu0 0.0
    %1286 = vmatpush.msra.mxu0 0.0
    %1287 = vmatpush.msra.mxu0 0.0
    %1288 = vmatpush.msra.mxu0 0.0
    %1289 = vmatpush.msra.mxu0 0.0
    %1290 = vmatpush.msra.mxu0 0.0
    %1291 = vmatpush.msra.mxu0 0.0
    %1292 = vmatpush.msra.mxu0 0.0
    %1293 = vmatpush.msra.mxu0 0.0
    %1294 = vmatpush.msra.mxu0 0.0
    %1295 = vmatpush.msra.mxu0 0.0
    %1296 = vmatpush.msra.mxu0 0.0
    %1297 = vmatpush.msra.mxu0 0.0
    %1298 = vmatpush.msra.mxu0 %v1275
    %1299 = vmatpush.msra.mxu0 %v1273
    %1300 = vmatmul.f32.gmra.mxu0 %v1279
    %v1301 = vpop.f32.mrf.mxu0
    %v1302 = vadd.f32 0.0, %v1301
    %1303 = vmatmul.f32.gmra.mxu0 %v1282
    %v1304 = vpop.f32.mrf.mxu0
    %v1305 = vadd.f32 0.0, %v1304
    %1306 = vdwg.mxu0
    %1309 = vrot.lane.b32.xlu0 %v1110, 8
    %v1310 = vpop.permute.xlu0 %1309
    %1311 = vrot.lane.b32.xlu0 %v1113, 8
    %v1312 = vpop.permute.xlu0 %1311
    %1317 = vrot.lane.b32.xlu0 %v1206, 16
    %v1318 = vpop.permute.xlu0 %1317
    %1319 = vrot.lane.b32.xlu0 %v1209, 16
    %v1320 = vpop.permute.xlu0 %1319
    %1325 = vrot.lane.b32.xlu0 %v1302, 24
    %v1326 = vpop.permute.xlu0 %1325
    %1327 = vrot.lane.b32.xlu0 %v1305, 24
    %v1328 = vpop.permute.xlu0 %1327
    %v1331 = vsel %vm238, %v1014, %v1310
    %v1332 = vsel %vm238, %v1017, %v1312
    %v1333 = vsel %vm270, %v1331, %v1318
    %v1334 = vsel %vm270, %v1332, %v1320
    %v1335 = vsel %vm644, %v1333, %v1326
    %v1336 = vsel %vm644, %v1334, %v1328
    %v1337 = vperm.slane %v894, 1
    %1342 = vrot.lane.b32.xlu0 %v885, 32
    %v1343 = vpop.permute.xlu0 %1342
    %1344 = vrot.lane.b32.xlu0 %v887, 32
    %v1345 = vpop.permute.xlu0 %1344
    %1346 = vrot.lane.b32.xlu0 %v889, 32
    %v1347 = vpop.permute.xlu0 %1346
    %1348 = vrot.lane.b32.xlu0 %v891, 32
    %v1349 = vpop.permute.xlu0 %1348
    %v1355 = vsel %vm120, %v1335, 0
    %v1358 = vsel %vm120, %v1336, 0
    %1360 = vmatpush.msra.mxu0 0.0
    %1361 = vmatpush.msra.mxu0 0.0
    %1362 = vmatpush.msra.mxu0 0.0
    %1363 = vmatpush.msra.mxu0 0.0
    %1364 = vmatpush.msra.mxu0 0.0
    %1365 = vmatpush.msra.mxu0 0.0
    %1366 = vmatpush.msra.mxu0 0.0
    %1367 = vmatpush.msra.mxu0 0.0
    %1368 = vmatpush.msra.mxu0 0.0
    %1369 = vmatpush.msra.mxu0 0.0
    %1370 = vmatpush.msra.mxu0 0.0
    %1371 = vmatpush.msra.mxu0 0.0
    %1372 = vmatpush.msra.mxu0 %v1349
    %1373 = vmatpush.msra.mxu0 %v1347
    %1374 = vmatpush.msra.mxu0 %v1345
    %1375 = vmatpush.msra.mxu0 %v1343
    %1376 = vmatmul.f32.gmra.mxu0 %v1355
    %v1377 = vpop.f32.mrf.mxu0
    %v1378 = vadd.f32 %v1337, %v1377
    %1379 = vmatmul.f32.gmra.mxu0 %v1358
    %v1380 = vpop.f32.mrf.mxu0
    %v1381 = vadd.f32 %v1337, %v1380
    %1382 = vdwg.mxu0
    %v1383 = vadd.f32 %v882, %v1378
    %v1384 = vadd.f32 %v883, %v1381
    %v1385 = vsel %vm120, %v1383, 0.0
    %1386 = vadd.xlane.f32.xlu0 %v1385
    %v1387 = vpop.xlane.xlu0 %1386
    %v1388 = vsel %vm120, %v1384, 0.0
    %1389 = vadd.xlane.f32.xlu0 %v1388
    %v1390 = vpop.xlane.xlu0 %1389
    %v1391 = vmul.f32 %v1387, %v133
    %v1392 = vmul.f32 %v1390, %v133
    %v1393 = vsub.f32 %v1383, %v1391
    %v1394 = vsub.f32 %v1384, %v1392
    %v1395 = vmul.f32 %v1393, %v1393
    %v1396 = vmul.f32 %v1394, %v1394
    %v1397 = vsel %vm120, %v1395, 0.0
    %1398 = vadd.xlane.f32.xlu0 %v1397
    %v1399 = vpop.xlane.xlu0 %1398
    %v1400 = vsel %vm120, %v1396, 0.0
    %1401 = vadd.xlane.f32.xlu0 %v1400
    %v1402 = vpop.xlane.xlu0 %1401
    %v1403 = vmul.f32 %v1399, %v133
    %v1404 = vmul.f32 %v1402, %v133
    %v1405 = vadd.f32 %v1403, 1e-12
    %v1406 = vadd.f32 %v1404, 1e-12
    %v1407 = vrsqrt.pop %v1405
    %v1408 = vmul.f32 %v1407, %v1405
    %v1409 = vmul.f32 %v1408, %v1407
    %v1410 = vmul.f32 0.5, %v1409
    %v1411 = vsub.f32 1.5, %v1410
    %v1412 = vmul.f32 %v1407, %v1411
    %vm1413 = vweird.f32 %v1405
    %vm1414 = vweird.f32 %v1407
    %vm1415 = vmor %vm1413, %vm1414
    %v1416 = vsel %vm1415, %v1407, %v1412
    %v1417 = vrsqrt.pop %v1406
    %v1418 = vmul.f32 %v1417, %v1406
    %v1419 = vmul.f32 %v1418, %v1417
    %v1420 = vmul.f32 0.5, %v1419
    %v1421 = vsub.f32 1.5, %v1420
    %v1422 = vmul.f32 %v1417, %v1421
    %vm1423 = vweird.f32 %v1406
    %vm1424 = vweird.f32 %v1417
    %vm1425 = vmor %vm1423, %vm1424
    %v1426 = vsel %vm1425, %v1417, %v1422
    %v1427 = vmul.f32 %v1393, %v1416
    %v1428 = vmul.f32 %v1394, %v1426
    %v1429 = vperm.slane %v894, 2
    %v1430 = vmul.f32 %v1427, %v1429
    %v1431 = vmul.f32 %v1428, %v1429
    %v1432 = vperm.slane %v894, 3
    %v1433 = vadd.f32 %v1430, %v1432
    %v1434 = vadd.f32 %v1431, %v1432
    %v1435 = vperm.slane %v894, 4
    %v1437 = vsel %vm120, %v1433, 0
    %v1440 = vsel %vm120, %v1434, 0
    %1442 = vmatpush.msra.mxu0 0.0
    %1443 = vmatpush.msra.mxu0 0.0
    %1444 = vmatpush.msra.mxu0 0.0
    %1445 = vmatpush.msra.mxu0 0.0
    %1446 = vmatpush.msra.mxu0 0.0
    %1447 = vmatpush.msra.mxu0 0.0
    %1448 = vmatpush.msra.mxu0 0.0
    %1449 = vmatpush.msra.mxu0 0.0
    %1450 = vmatpush.msra.mxu0 0.0
    %1451 = vmatpush.msra.mxu0 0.0
    %1452 = vmatpush.msra.mxu0 0.0
    %1453 = vmatpush.msra.mxu0 0.0
    %1454 = vmatpush.msra.mxu0 %v892
    %1455 = vmatpush.msra.mxu0 %v890
    %1456 = vmatpush.msra.mxu0 %v888
    %1457 = vmatpush.msra.mxu0 %v886
    %1458 = vmatmul.f32.gmra.mxu0 %v1437
    %v1459 = vpop.f32.mrf.mxu0
    %v1460 = vadd.f32 %v1435, %v1459
    %1461 = vmatmul.f32.gmra.mxu0 %v1440
    %v1462 = vpop.f32.mrf.mxu0
    %v1463 = vadd.f32 %v1435, %v1462
    %1464 = vdwg.mxu0
    %v1465 = vmul.f32 %v1460, 0.5
    %v1466 = vmul.f32 %v1463, 0.5
    %v1467 = vmul.f32 %v1460, 0.044715
    %v1468 = vmul.f32 %v1463, 0.044715
    %v1469 = vmul.f32 %v1467, %v1460
    %v1470 = vmul.f32 %v1468, %v1463
    %v1471 = vmul.f32 %v1469, %v1460
    %v1472 = vmul.f32 %v1470, %v1463
    %v1473 = vadd.f32 %v1460, %v1471
    %v1474 = vadd.f32 %v1463, %v1472
    %v1475 = vmul.f32 %v1473, 0.7978846
    %v1476 = vmul.f32 %v1474, 0.7978846
    %v1477 = vtanh.pop %v1475
    %v1478 = vtanh.pop %v1476
    %v1479 = vadd.f32 %v1477, 1.0
    %v1480 = vadd.f32 %v1478, 1.0
    %v1481 = vmul.f32 %v1465, %v1479
    %v1482 = vmul.f32 %v1466, %v1480
    %s1483 = scalar_lea.vmem %s4, 64
    %v1484 = vld [vmem:[%s1483] sm:$0xff]
    %v1485 = vld [vmem:[%s1483 + $0x8] sm:$0xff]
    %v1486 = vld [vmem:[%s1483 + $0x10] sm:$0xff]
    %v1487 = vld [vmem:[%s1483 + $0x18] sm:$0xff]
    %v1488 = vld [vmem:[%s1483 + $0x20] sm:$0xff]
    %v1489 = vld [vmem:[%s1483 + $0x28] sm:$0xff]
    %v1490 = vld [vmem:[%s1483 + $0x30] sm:$0xff]
    %v1491 = vld [vmem:[%s1483 + $0x38] sm:$0xff]
    %v1492 = vperm.slane %v894, 5
    %v1494 = vsel %vm802, %v1481, 0
    %v1497 = vsel %vm802, %v1482, 0
    %1499 = vmatpush.msra.mxu0 0.0
    %1500 = vmatpush.msra.mxu0 0.0
    %1501 = vmatpush.msra.mxu0 0.0
    %1502 = vmatpush.msra.mxu0 0.0
    %1503 = vmatpush.msra.mxu0 0.0
    %1504 = vmatpush.msra.mxu0 0.0
    %1505 = vmatpush.msra.mxu0 0.0
    %1506 = vmatpush.msra.mxu0 0.0
    %1507 = vmatpush.msra.mxu0 %v1491
    %1508 = vmatpush.msra.mxu0 %v1490
    %1509 = vmatpush.msra.mxu0 %v1489
    %1510 = vmatpush.msra.mxu0 %v1488
    %1511 = vmatpush.msra.mxu0 %v1487
    %1512 = vmatpush.msra.mxu0 %v1486
    %1513 = vmatpush.msra.mxu0 %v1485
    %1514 = vmatpush.msra.mxu0 %v1484
    %1515 = vmatmul.f32.gmra.mxu0 %v1494
    %v1516 = vpop.f32.mrf.mxu0
    %v1517 = vadd.f32 %v1492, %v1516
    %1518 = vmatmul.f32.gmra.mxu0 %v1497
    %v1519 = vpop.f32.mrf.mxu0
    %v1520 = vadd.f32 %v1492, %v1519
    %1521 = vdwg.mxu0
    %v1522 = vadd.f32 %v1433, %v1517
    %v1523 = vadd.f32 %v1434, %v1520
    %v1524 = vsel %vm120, %v1522, 0.0
    %1525 = vadd.xlane.f32.xlu0 %v1524
    %v1526 = vpop.xlane.xlu0 %1525
    %v1527 = vsel %vm120, %v1523, 0.0
    %1528 = vadd.xlane.f32.xlu0 %v1527
    %v1529 = vpop.xlane.xlu0 %1528
    %v1530 = vmul.f32 %v1526, %v133
    %v1531 = vmul.f32 %v1529, %v133
    %v1532 = vsub.f32 %v1522, %v1530
    %v1533 = vsub.f32 %v1523, %v1531
    %v1534 = vmul.f32 %v1532, %v1532
    %v1535 = vmul.f32 %v1533, %v1533
    %v1536 = vsel %vm120, %v1534, 0.0
    %1537 = vadd.xlane.f32.xlu0 %v1536
    %v1538 = vpop.xlane.xlu0 %1537
    %v1539 = vsel %vm120, %v1535, 0.0
    %1540 = vadd.xlane.f32.xlu0 %v1539
    %v1541 = vpop.xlane.xlu0 %1540
    %v1542 = vmul.f32 %v1538, %v133
    %v1543 = vmul.f32 %v1541, %v133
    %v1544 = vadd.f32 %v1542, 1e-12
    %v1545 = vadd.f32 %v1543, 1e-12
    %v1546 = vrsqrt.pop %v1544
    %v1547 = vmul.f32 %v1546, %v1544
    %v1548 = vmul.f32 %v1547, %v1546
    %v1549 = vmul.f32 0.5, %v1548
    %v1550 = vsub.f32 1.5, %v1549
    %v1551 = vmul.f32 %v1546, %v1550
    %vm1552 = vweird.f32 %v1544
    %vm1553 = vweird.f32 %v1546
    %vm1554 = vmor %vm1552, %vm1553
    %v1555 = vsel %vm1554, %v1546, %v1551
    %v1556 = vrsqrt.pop %v1545
    %v1557 = vmul.f32 %v1556, %v1545
    %v1558 = vmul.f32 %v1557, %v1556
    %v1559 = vmul.f32 0.5, %v1558
    %v1560 = vsub.f32 1.5, %v1559
    %v1561 = vmul.f32 %v1556, %v1560
    %vm1562 = vweird.f32 %v1545
    %vm1563 = vweird.f32 %v1556
    %vm1564 = vmor %vm1562, %vm1563
    %v1565 = vsel %vm1564, %v1556, %v1561
    %v1566 = vmul.f32 %v1532, %v1555
    %v1567 = vmul.f32 %v1533, %v1565
    %v1568 = vperm.slane %v894, 6
    %v1569 = vmul.f32 %v1566, %v1568
    %v1570 = vmul.f32 %v1567, %v1568
    %v1571 = vperm.slane %v894, 7
    %v1572 = vadd.f32 %v1569, %v1571
    %v1573 = vadd.f32 %v1570, %v1571
    %v1574 = vld [vmem:[#allocation2 + $0x50] sm:$0xff]
    %v1575 = vld [vmem:[#allocation2 + $0x58] sm:$0xff]
    %v1576 = vld [vmem:[#allocation2 + $0x60] sm:$0xff]
    %v1577 = vld [vmem:[#allocation2 + $0x68] sm:$0xff]
    %v1578 = vld [vmem:[#allocation2 + $0x72] sm:$0x1]
    %v1579 = vperm.slane %v1578, 0
    %v1581 = vsel %vm120, %v1572, 0
    %v1584 = vsel %vm120, %v1573, 0
    %1586 = vmatpush.msra.mxu0 0.0
    %1587 = vmatpush.msra.mxu0 0.0
    %1588 = vmatpush.msra.mxu0 0.0
    %1589 = vmatpush.msra.mxu0 0.0
    %1590 = vmatpush.msra.mxu0 0.0
    %1591 = vmatpush.msra.mxu0 0.0
    %1592 = vmatpush.msra.mxu0 0.0
    %1593 = vmatpush.msra.mxu0 0.0
    %1594 = vmatpush.msra.mxu0 0.0
    %1595 = vmatpush.msra.mxu0 0.0
    %1596 = vmatpush.msra.mxu0 0.0
    %1597 = vmatpush.msra.mxu0 0.0
    %1598 = vmatpush.msra.mxu0 %v1577
    %1599 = vmatpush.msra.mxu0 %v1576
    %1600 = vmatpush.msra.mxu0 %v1575
    %1601 = vmatpush.msra.mxu0 %v1574
    %1602 = vmatmul.f32.gmra.mxu0 %v1581
    %v1603 = vpop.f32.mrf.mxu0
    %v1604 = vadd.f32 %v1579, %v1603
    %1605 = vmatmul.f32.gmra.mxu0 %v1584
    %v1606 = vpop.f32.mrf.mxu0
    %v1607 = vadd.f32 %v1579, %v1606
    %1608 = vdwg.mxu0
    %1609 = vst [vmem:[%s6] sm:$0xff] %v1604
    %1610 = vst [vmem:[%s6 + $0x8] sm:$0xff] %v1607
    // Predicated region
    $region30: #{simple_bert_classifier.1} parent=1 // pred_check
      _
    $region31: #{simple_bert_classifier.1} parent=1 // pred_check_branch
      %1612 = sbr.rel (0) target = $region33
    $region32: #{simple_bert_classifier.1} parent=1 // pred_region
      _
    $region33: #{simple_bert_classifier.1} parent=1 // pred_fallthru
      _
    // Predicated region
    $region34: #{simple_bert_classifier.1} parent=1 // pred_check
      _
    $region35: #{simple_bert_classifier.1} parent=1 // pred_check_branch
      %1614 = sbr.rel (0) target = $region37
    $region36: #{simple_bert_classifier.1} parent=1 // pred_region
      _
    $region37: #{simple_bert_classifier.1} parent=1 // pred_fallthru
      _
    %1615 = vsyncpa [#allocation3], 1

</llo_original>
